<compile_context>
chip_gen: v6e
topology: v6e:2x2x1
jax: 0.10.0
libtpu: 0.0.40
codegen_flags: <defaults>
</compile_context>

<pallas_src>
import jax
import jax.numpy as jnp
from jax.experimental import pallas as pl
from jax.experimental.pallas import tpu as pltpu

LAYER_SIZES = [1, 256, 256, 256, 1]
D1 = 256           # hidden width of each Fcl layer
DR = 3 * D1        # width of R = sum(layer_sizes) - first - last = 768
DH = 512           # Bias_Net hidden width


def _round_up(n, m):
    return ((n + m - 1) // m) * m


def _delu_kernel(x_ref, w0_ref, b0_ref, w1_ref, b1_ref, w2_ref, b2_ref,
                 w3_ref, wh_ref, bh_ref, wl_ref, bl_ref, out_ref):
    f32 = jnp.float32
    x = x_ref[...]                                               # (TB, 1)

    # ---- Fcl_Net -----------------------------------------------------------
    # Layer 0: Linear(1 -> 256) + ReLU.  K=1 contraction -> VPU broadcast mul.
    h1 = jnp.maximum(x * w0_ref[...] + b0_ref[...], 0.0)         # (TB, 256)
    r1 = (h1 > 0.0).astype(f32)

    # Layer 1: Linear(256 -> 256) + ReLU (MXU).
    h2 = jnp.maximum(
        jnp.dot(h1, w1_ref[...], preferred_element_type=f32) + b1_ref[...], 0.0)
    r2 = (h2 > 0.0).astype(f32)

    # Layer 2: Linear(256 -> 256) + ReLU (MXU).
    h3 = jnp.maximum(
        jnp.dot(h2, w2_ref[...], preferred_element_type=f32) + b2_ref[...], 0.0)
    r3 = (h3 > 0.0).astype(f32)

    # Last Fcl layer: Linear(256 -> 1), bias=False.  N=1 -> mul + lane reduce.
    h_fcl = jnp.sum(h3 * w3_ref[...], axis=-1, keepdims=True)    # (TB, 1)

    # ---- Bias_Net ----------------------------------------------------------
    # R @ Wh without materializing concat(R): split Wh into three 256-row
    # blocks (static, 8-aligned slices of the resident weight).
    zb = jnp.dot(r1, wh_ref[0:D1, :], preferred_element_type=f32)
    zb = zb + jnp.dot(r2, wh_ref[D1:2 * D1, :], preferred_element_type=f32)
    zb = zb + jnp.dot(r3, wh_ref[2 * D1:3 * D1, :], preferred_element_type=f32)
    hb = jnp.tanh(zb + bh_ref[...])                              # (TB, 512)

    # Last Bias_Net layer: Linear(512 -> 1).  N=1 -> mul + lane reduce.
    h_bias = jnp.sum(hb * wl_ref[...], axis=-1, keepdims=True) + bl_ref[...]

    out_ref[...] = (h_fcl + h_bias).astype(out_ref.dtype)


def delu_forward(x, params, *, tb=1024):
    """x: (B, 1) float32. Returns (B, 1) float32 = Fcl_Net(x)[0] + Bias_Net(R)."""
    B = x.shape[0]

    # Batch tile: multiple of 8 (sublane rule), no larger than the padded batch.
    tb = max(8, min(_round_up(tb, 8), _round_up(B, 8)))
    Bp = _round_up(B, tb)
    if Bp != B:
        x = jnp.pad(x, ((0, Bp - B), (0, 0)))
    grid = (pl.cdiv(Bp, tb),)

    # Weights/biases: full-extent blocks, constant block index -> VMEM-resident.
    def resident(shape):
        return pl.BlockSpec(shape, lambda i: tuple(0 for _ in shape))

    def batched(last):
        return pl.BlockSpec((tb, last), lambda i: (i, 0))

    out = pl.pallas_call(
        _delu_kernel,
        out_shape=jax.ShapeDtypeStruct((Bp, 1), jnp.float32),
        grid=grid,
        in_specs=[
            batched(1),                                   # x
            resident((1, D1)), resident((1, D1)),         # w0 (row), b0
            resident((D1, D1)), resident((1, D1)),        # w1 (in,out), b1
            resident((D1, D1)), resident((1, D1)),        # w2 (in,out), b2
            resident((1, D1)),                            # w3 (torch layout (1,256))
            resident((DR, DH)), resident((1, DH)),        # wh (in,out), bh
            resident((1, DH)), resident((1, 1)),          # wl (torch layout), bl
        ],
        out_specs=batched(1),
        compiler_params=pltpu.CompilerParams(
            dimension_semantics=("parallel",),            # megacore-shard batch on v7x
            vmem_limit_bytes=48 << 20,
        ),
    )(x,
      params["w0"], params["b0"], params["w1"], params["b1"],
      params["w2"], params["b2"], params["w3"],
      params["wh"], params["bh"], params["wl"], params["bl"])
    return out[:B]


def init_params(key):
    """Deterministic init. Fcl_Net: Xavier-normal (gain=1) weights, zero biases
    (last layer bias=False).  Bias_Net: deterministic scaled normals (torch's
    default init differs numerically but forward semantics are identical)."""
    ks = jax.random.split(key, 5)

    def xavier_torch(k, fan_in, fan_out):
        std = (2.0 / (fan_in + fan_out)) ** 0.5
        return std * jax.random.normal(k, (fan_out, fan_in), dtype=jnp.float32)

    w0_t = xavier_torch(ks[0], 1, D1)      # (256, 1)
    w1_t = xavier_torch(ks[1], D1, D1)     # (256, 256)
    w2_t = xavier_torch(ks[2], D1, D1)     # (256, 256)
    w3_t = xavier_torch(ks[3], D1, 1)      # (1, 256)

    k_wh, k_wl, k_bh, k_bl = jax.random.split(ks[4], 4)
    wh_t = (1.0 / DR ** 0.5) * jax.random.normal(k_wh, (DH, DR), dtype=jnp.float32)
    bh = (1.0 / DR ** 0.5) * jax.random.normal(k_bh, (1, DH), dtype=jnp.float32)
    wl_t = (1.0 / DH ** 0.5) * jax.random.normal(k_wl, (1, DH), dtype=jnp.float32)
    bl = (1.0 / DH ** 0.5) * jax.random.normal(k_bl, (1, 1), dtype=jnp.float32)

    return {
        "w0": w0_t.T,                                  # (1, 256) row for broadcast-mul
        "b0": jnp.zeros((1, D1), jnp.float32),
        "w1": w1_t.T,                                  # (256, 256) as (in, out)
        "b1": jnp.zeros((1, D1), jnp.float32),
        "w2": w2_t.T,                                  # (256, 256) as (in, out)
        "b2": jnp.zeros((1, D1), jnp.float32),
        "w3": w3_t,                                    # (1, 256) torch layout
        "wh": wh_t.T,                                  # (768, 512) as (in, out)
        "bh": bh,                                      # (1, 512)
        "wl": wl_t,                                    # (1, 512) torch layout
        "bl": bl,                                      # (1, 1)
    }


def _reference(x, params):
    h1 = jnp.maximum(x * params["w0"] + params["b0"], 0.0)
    r1 = (h1 > 0).astype(jnp.float32)
    h2 = jnp.maximum(h1 @ params["w1"] + params["b1"], 0.0)
    r2 = (h2 > 0).astype(jnp.float32)
    h3 = jnp.maximum(h2 @ params["w2"] + params["b2"], 0.0)
    r3 = (h3 > 0).astype(jnp.float32)
    h_fcl = h3 @ params["w3"].T                        # (B, 1), no bias
    R = jnp.concatenate([r1, r2, r3], axis=1)          # (B, 768)
    hb = jnp.tanh(R @ params["wh"] + params["bh"])
    h_bias = hb @ params["wl"].T + params["bl"]
    return h_fcl + h_bias


if __name__ == "__main__":
    key = jax.random.PRNGKey(0)
    pkey, xkey = jax.random.split(key)
    params = init_params(pkey)

    # Small smoke test (single grid step).
    B = 8
    x = jax.random.normal(xkey, (B, 1), dtype=jnp.float32)
    out = delu_forward(x, params)
    jax.block_until_ready(out)
    ref = _reference(x, params)
    assert out.shape == (B, 1)
    assert jnp.allclose(out, ref, atol=1e-4, rtol=1e-4)

    # Ragged batch: exercises tiling, padding and the parallel batch grid.
    B2 = 300
    x2 = jax.random.normal(jax.random.fold_in(xkey, 1), (B2, 1), dtype=jnp.float32)
    out2 = delu_forward(x2, params, tb=128)
    jax.block_until_ready(out2)
    ref2 = _reference(x2, params)
    assert out2.shape == (B2, 1)
    assert jnp.allclose(out2, ref2, atol=1e-4, rtol=1e-4)

    print("KERNEL_OK")
</pallas_src>

<mosaic_0001>
module attributes {stable_mosaic.version = 11 : i64} {
  func.func @_delu_kernel(%arg0: i32, %arg1: memref<8x1xf32, #tpu.memory_space<vmem>>, %arg2: memref<1x256xf32, #tpu.memory_space<vmem>>, %arg3: memref<1x256xf32, #tpu.memory_space<vmem>>, %arg4: memref<256x256xf32, #tpu.memory_space<vmem>>, %arg5: memref<1x256xf32, #tpu.memory_space<vmem>>, %arg6: memref<256x256xf32, #tpu.memory_space<vmem>>, %arg7: memref<1x256xf32, #tpu.memory_space<vmem>>, %arg8: memref<1x256xf32, #tpu.memory_space<vmem>>, %arg9: memref<768x512xf32, #tpu.memory_space<vmem>>, %arg10: memref<1x512xf32, #tpu.memory_space<vmem>>, %arg11: memref<1x512xf32, #tpu.memory_space<vmem>>, %arg12: memref<1x1xf32, #tpu.memory_space<vmem>>, %arg13: memref<8x1xf32, #tpu.memory_space<vmem>>) attributes {dimension_semantics = [#tpu.dimension_semantics<parallel>], iteration_bounds = array<i64: 1>, scalar_prefetch = 0 : i64, scratch_operands = 0 : i64, tpu.core_type = #tpu.core_type<tc>, window_params = [{transform_indices = @transform_0, window_bounds = array<i64: 8, 1>}, {pipeline_mode = #tpu.pipeline_mode<synchronous>, transform_indices = @transform_1, window_bounds = array<i64: 1, 256>}, {pipeline_mode = #tpu.pipeline_mode<synchronous>, transform_indices = @transform_2, window_bounds = array<i64: 1, 256>}, {pipeline_mode = #tpu.pipeline_mode<synchronous>, transform_indices = @transform_3, window_bounds = array<i64: 256, 256>}, {pipeline_mode = #tpu.pipeline_mode<synchronous>, transform_indices = @transform_4, window_bounds = array<i64: 1, 256>}, {pipeline_mode = #tpu.pipeline_mode<synchronous>, transform_indices = @transform_5, window_bounds = array<i64: 256, 256>}, {pipeline_mode = #tpu.pipeline_mode<synchronous>, transform_indices = @transform_6, window_bounds = array<i64: 1, 256>}, {pipeline_mode = #tpu.pipeline_mode<synchronous>, transform_indices = @transform_7, window_bounds = array<i64: 1, 256>}, {pipeline_mode = #tpu.pipeline_mode<synchronous>, transform_indices = @transform_8, window_bounds = array<i64: 768, 512>}, {pipeline_mode = #tpu.pipeline_mode<synchronous>, transform_indices = @transform_9, window_bounds = array<i64: 1, 512>}, {pipeline_mode = #tpu.pipeline_mode<synchronous>, transform_indices = @transform_10, window_bounds = array<i64: 1, 512>}, {pipeline_mode = #tpu.pipeline_mode<synchronous>, transform_indices = @transform_11, window_bounds = array<i64: 1, 1>}, {transform_indices = @transform_12, window_bounds = array<i64: 8, 1>}]} {
    %c0 = arith.constant 0 : index
    %c0_0 = arith.constant 0 : index
    %0 = vector.load %arg1[%c0, %c0_0] : memref<8x1xf32, #tpu.memory_space<vmem>>, vector<8x1xf32>
    %c0_1 = arith.constant 0 : index
    %c0_2 = arith.constant 0 : index
    %1 = vector.load %arg2[%c0_1, %c0_2] : memref<1x256xf32, #tpu.memory_space<vmem>>, vector<1x256xf32>
    %2 = vector.broadcast %0 : vector<8x1xf32> to vector<8x256xf32>
    %3 = vector.broadcast %1 : vector<1x256xf32> to vector<8x256xf32>
    %4 = arith.mulf %2, %3 : vector<8x256xf32>
    %c0_3 = arith.constant 0 : index
    %c0_4 = arith.constant 0 : index
    %5 = vector.load %arg3[%c0_3, %c0_4] : memref<1x256xf32, #tpu.memory_space<vmem>>, vector<1x256xf32>
    %6 = vector.broadcast %5 : vector<1x256xf32> to vector<8x256xf32>
    %7 = arith.addf %4, %6 : vector<8x256xf32>
    %cst = arith.constant 0.000000e+00 : f32
    %8 = vector.broadcast %cst : f32 to vector<8x256xf32>
    %9 = arith.maximumf %7, %8 : vector<8x256xf32>
    %cst_5 = arith.constant 0.000000e+00 : f32
    %10 = vector.broadcast %cst_5 : f32 to vector<8x256xf32>
    %11 = arith.cmpf ogt, %9, %10 : vector<8x256xf32>
    %12 = arith.extui %11 : vector<8x256xi1> to vector<8x256xi32>
    %13 = arith.sitofp %12 : vector<8x256xi32> to vector<8x256xf32>
    %c0_6 = arith.constant 0 : index
    %c0_7 = arith.constant 0 : index
    %14 = vector.load %arg4[%c0_6, %c0_7] : memref<256x256xf32, #tpu.memory_space<vmem>>, vector<256x256xf32>
    %cst_8 = arith.constant dense<0.000000e+00> : vector<8x256xf32>
    %15 = tpu.matmul %9, %14, %cst_8 {dimension_numbers = #tpu.dot_dimension_numbers<[1], [0], [0], [1], [0, 0, 1, 1], [], []>} : vector<8x256xf32>, vector<256x256xf32>, vector<8x256xf32> -> vector<8x256xf32>
    %c0_9 = arith.constant 0 : index
    %c0_10 = arith.constant 0 : index
    %16 = vector.load %arg5[%c0_9, %c0_10] : memref<1x256xf32, #tpu.memory_space<vmem>>, vector<1x256xf32>
    %17 = vector.broadcast %16 : vector<1x256xf32> to vector<8x256xf32>
    %18 = arith.addf %15, %17 : vector<8x256xf32>
    %cst_11 = arith.constant 0.000000e+00 : f32
    %19 = vector.broadcast %cst_11 : f32 to vector<8x256xf32>
    %20 = arith.maximumf %18, %19 : vector<8x256xf32>
    %cst_12 = arith.constant 0.000000e+00 : f32
    %21 = vector.broadcast %cst_12 : f32 to vector<8x256xf32>
    %22 = arith.cmpf ogt, %20, %21 : vector<8x256xf32>
    %23 = arith.extui %22 : vector<8x256xi1> to vector<8x256xi32>
    %24 = arith.sitofp %23 : vector<8x256xi32> to vector<8x256xf32>
    %c0_13 = arith.constant 0 : index
    %c0_14 = arith.constant 0 : index
    %25 = vector.load %arg6[%c0_13, %c0_14] : memref<256x256xf32, #tpu.memory_space<vmem>>, vector<256x256xf32>
    %cst_15 = arith.constant dense<0.000000e+00> : vector<8x256xf32>
    %26 = tpu.matmul %20, %25, %cst_15 {dimension_numbers = #tpu.dot_dimension_numbers<[1], [0], [0], [1], [0, 0, 1, 1], [], []>} : vector<8x256xf32>, vector<256x256xf32>, vector<8x256xf32> -> vector<8x256xf32>
    %c0_16 = arith.constant 0 : index
    %c0_17 = arith.constant 0 : index
    %27 = vector.load %arg7[%c0_16, %c0_17] : memref<1x256xf32, #tpu.memory_space<vmem>>, vector<1x256xf32>
    %28 = vector.broadcast %27 : vector<1x256xf32> to vector<8x256xf32>
    %29 = arith.addf %26, %28 : vector<8x256xf32>
    %cst_18 = arith.constant 0.000000e+00 : f32
    %30 = vector.broadcast %cst_18 : f32 to vector<8x256xf32>
    %31 = arith.maximumf %29, %30 : vector<8x256xf32>
    %cst_19 = arith.constant 0.000000e+00 : f32
    %32 = vector.broadcast %cst_19 : f32 to vector<8x256xf32>
    %33 = arith.cmpf ogt, %31, %32 : vector<8x256xf32>
    %34 = arith.extui %33 : vector<8x256xi1> to vector<8x256xi32>
    %35 = arith.sitofp %34 : vector<8x256xi32> to vector<8x256xf32>
    %c0_20 = arith.constant 0 : index
    %c0_21 = arith.constant 0 : index
    %36 = vector.load %arg8[%c0_20, %c0_21] : memref<1x256xf32, #tpu.memory_space<vmem>>, vector<1x256xf32>
    %37 = vector.broadcast %36 : vector<1x256xf32> to vector<8x256xf32>
    %38 = arith.mulf %31, %37 : vector<8x256xf32>
    %cst_22 = arith.constant dense<0.000000e+00> : vector<8xf32>
    %39 = vector.multi_reduction <add>, %38, %cst_22 [1] : vector<8x256xf32> to vector<8xf32>
    %40 = vector.shape_cast %39 : vector<8xf32> to vector<8x1xf32>
    %c0_23 = arith.constant 0 : index
    %c0_24 = arith.constant 0 : index
    %41 = vector.load %arg9[%c0_23, %c0_24] : memref<768x512xf32, #tpu.memory_space<vmem>>, vector<256x512xf32>
    %cst_25 = arith.constant dense<0.000000e+00> : vector<8x512xf32>
    %42 = tpu.matmul %13, %41, %cst_25 {dimension_numbers = #tpu.dot_dimension_numbers<[1], [0], [0], [1], [0, 0, 1, 1], [], []>} : vector<8x256xf32>, vector<256x512xf32>, vector<8x512xf32> -> vector<8x512xf32>
    %c256 = arith.constant 256 : index
    %c0_26 = arith.constant 0 : index
    %43 = vector.load %arg9[%c256, %c0_26] : memref<768x512xf32, #tpu.memory_space<vmem>>, vector<256x512xf32>
    %cst_27 = arith.constant dense<0.000000e+00> : vector<8x512xf32>
    %44 = tpu.matmul %24, %43, %cst_27 {dimension_numbers = #tpu.dot_dimension_numbers<[1], [0], [0], [1], [0, 0, 1, 1], [], []>} : vector<8x256xf32>, vector<256x512xf32>, vector<8x512xf32> -> vector<8x512xf32>
    %45 = arith.addf %42, %44 : vector<8x512xf32>
    %c512 = arith.constant 512 : index
    %c0_28 = arith.constant 0 : index
    %46 = vector.load %arg9[%c512, %c0_28] : memref<768x512xf32, #tpu.memory_space<vmem>>, vector<256x512xf32>
    %cst_29 = arith.constant dense<0.000000e+00> : vector<8x512xf32>
    %47 = tpu.matmul %35, %46, %cst_29 {dimension_numbers = #tpu.dot_dimension_numbers<[1], [0], [0], [1], [0, 0, 1, 1], [], []>} : vector<8x256xf32>, vector<256x512xf32>, vector<8x512xf32> -> vector<8x512xf32>
    %48 = arith.addf %45, %47 : vector<8x512xf32>
    %c0_30 = arith.constant 0 : index
    %c0_31 = arith.constant 0 : index
    %49 = vector.load %arg10[%c0_30, %c0_31] : memref<1x512xf32, #tpu.memory_space<vmem>>, vector<1x512xf32>
    %50 = vector.broadcast %49 : vector<1x512xf32> to vector<8x512xf32>
    %51 = arith.addf %48, %50 : vector<8x512xf32>
    %52 = math.tanh %51 : vector<8x512xf32>
    %c0_32 = arith.constant 0 : index
    %c0_33 = arith.constant 0 : index
    %53 = vector.load %arg11[%c0_32, %c0_33] : memref<1x512xf32, #tpu.memory_space<vmem>>, vector<1x512xf32>
    %54 = vector.broadcast %53 : vector<1x512xf32> to vector<8x512xf32>
    %55 = arith.mulf %52, %54 : vector<8x512xf32>
    %cst_34 = arith.constant dense<0.000000e+00> : vector<8xf32>
    %56 = vector.multi_reduction <add>, %55, %cst_34 [1] : vector<8x512xf32> to vector<8xf32>
    %57 = vector.shape_cast %56 : vector<8xf32> to vector<8x1xf32>
    %c0_35 = arith.constant 0 : index
    %c0_36 = arith.constant 0 : index
    %58 = vector.load %arg12[%c0_35, %c0_36] : memref<1x1xf32, #tpu.memory_space<vmem>>, vector<1x1xf32>
    %59 = vector.broadcast %58 : vector<1x1xf32> to vector<8x1xf32>
    %60 = arith.addf %57, %59 : vector<8x1xf32>
    %61 = arith.addf %40, %60 : vector<8x1xf32>
    %c0_37 = arith.constant 0 : index
    %c0_38 = arith.constant 0 : index
    %62 = vector.load %arg13[%c0_37, %c0_38] : memref<8x1xf32, #tpu.memory_space<vmem>>, vector<8x1xf32>
    tpu.vector_store %arg13[%c0_37, %c0_38], %61 {strides = array<i32>} : memref<8x1xf32, #tpu.memory_space<vmem>>, vector<8x1xf32>,
    return
  }
  func.func @transform_0(%arg0: i32) -> (i32, i32) {
    %c0_i32 = arith.constant 0 : i32
    %c0_i32_0 = arith.constant 0 : i32
    return %arg0, %c0_i32 : i32, i32
  }
  func.func @transform_1(%arg0: i32) -> (i32, i32) {
    %c0_i32 = arith.constant 0 : i32
    %c0_i32_0 = arith.constant 0 : i32
    %c0_i32_1 = arith.constant 0 : i32
    return %c0_i32, %c0_i32_0 : i32, i32
  }
  func.func @transform_2(%arg0: i32) -> (i32, i32) {
    %c0_i32 = arith.constant 0 : i32
    %c0_i32_0 = arith.constant 0 : i32
    %c0_i32_1 = arith.constant 0 : i32
    return %c0_i32, %c0_i32_0 : i32, i32
  }
  func.func @transform_3(%arg0: i32) -> (i32, i32) {
    %c0_i32 = arith.constant 0 : i32
    %c0_i32_0 = arith.constant 0 : i32
    %c0_i32_1 = arith.constant 0 : i32
    return %c0_i32, %c0_i32_0 : i32, i32
  }
  func.func @transform_4(%arg0: i32) -> (i32, i32) {
    %c0_i32 = arith.constant 0 : i32
    %c0_i32_0 = arith.constant 0 : i32
    %c0_i32_1 = arith.constant 0 : i32
    return %c0_i32, %c0_i32_0 : i32, i32
  }
  func.func @transform_5(%arg0: i32) -> (i32, i32) {
    %c0_i32 = arith.constant 0 : i32
    %c0_i32_0 = arith.constant 0 : i32
    %c0_i32_1 = arith.constant 0 : i32
    return %c0_i32, %c0_i32_0 : i32, i32
  }
  func.func @transform_6(%arg0: i32) -> (i32, i32) {
    %c0_i32 = arith.constant 0 : i32
    %c0_i32_0 = arith.constant 0 : i32
    %c0_i32_1 = arith.constant 0 : i32
    return %c0_i32, %c0_i32_0 : i32, i32
  }
  func.func @transform_7(%arg0: i32) -> (i32, i32) {
    %c0_i32 = arith.constant 0 : i32
    %c0_i32_0 = arith.constant 0 : i32
    %c0_i32_1 = arith.constant 0 : i32
    return %c0_i32, %c0_i32_0 : i32, i32
  }
  func.func @transform_8(%arg0: i32) -> (i32, i32) {
    %c0_i32 = arith.constant 0 : i32
    %c0_i32_0 = arith.constant 0 : i32
    %c0_i32_1 = arith.constant 0 : i32
    return %c0_i32, %c0_i32_0 : i32, i32
  }
  func.func @transform_9(%arg0: i32) -> (i32, i32) {
    %c0_i32 = arith.constant 0 : i32
    %c0_i32_0 = arith.constant 0 : i32
    %c0_i32_1 = arith.constant 0 : i32
    return %c0_i32, %c0_i32_0 : i32, i32
  }
  func.func @transform_10(%arg0: i32) -> (i32, i32) {
    %c0_i32 = arith.constant 0 : i32
    %c0_i32_0 = arith.constant 0 : i32
    %c0_i32_1 = arith.constant 0 : i32
    return %c0_i32, %c0_i32_0 : i32, i32
  }
  func.func @transform_11(%arg0: i32) -> (i32, i32) {
    %c0_i32 = arith.constant 0 : i32
    %c0_i32_0 = arith.constant 0 : i32
    %c0_i32_1 = arith.constant 0 : i32
    return %c0_i32, %c0_i32_0 : i32, i32
  }
  func.func @transform_12(%arg0: i32) -> (i32, i32) {
    %c0_i32 = arith.constant 0 : i32
    %c0_i32_0 = arith.constant 0 : i32
    return %arg0, %c0_i32 : i32, i32
  }
}

</mosaic_0001>

<llo_original>
// kernel: tpu_custom_call.1
$region0: #{tpu_custom_call.1}
  #allocation0 [shape = 'u32[]', space=smem, size = 0x4, offset = 0x4, fixed_abs, tag = 'smem constant byte address 0x4 - core index']
  #allocation1 [shape = 'u32[144,128]{1,0:T(1,128)}', space=vmem, size = 0x12000, scoped, tag = 'internal scratch']
  #allocation2 [shape = 'f32[1,1]{1,0:T(1,128)S(1)}', space=vmem, size = 0x200, scoped, tag = 'scoped memory for tpu_custom_call.1']
  %s0 = inlined_call_operand.vmem [shape: f32[8,1], index: 0, kind: input, shape index: {}]
  %s1 = inlined_call_operand.hbm [shape: f32[1,256], index: 1, kind: input, shape index: {}]
  %s2 = inlined_call_operand.hbm [shape: f32[1,256], index: 2, kind: input, shape index: {}]
  %s3 = inlined_call_operand.hbm [shape: f32[256,256], index: 3, kind: input, shape index: {}]
  %s4 = inlined_call_operand.hbm [shape: f32[1,256], index: 4, kind: input, shape index: {}]
  %s5 = inlined_call_operand.hbm [shape: f32[256,256], index: 5, kind: input, shape index: {}]
  %s6 = inlined_call_operand.hbm [shape: f32[1,256], index: 6, kind: input, shape index: {}]
  %s7 = inlined_call_operand.hbm [shape: f32[1,256], index: 7, kind: input, shape index: {}]
  %s8 = inlined_call_operand.hbm [shape: f32[768,512], index: 8, kind: input, shape index: {}]
  %s9 = inlined_call_operand.hbm [shape: f32[1,512], index: 9, kind: input, shape index: {}]
  %s10 = inlined_call_operand.hbm [shape: f32[1,512], index: 10, kind: input, shape index: {}]
  %s11 = inlined_call_operand.<no memory space> [shape: f32[1,1], index: 11, kind: input, shape index: {}]
  %s12 = inlined_call_operand.vmem [shape: f32[8,1], index: 12, kind: output, shape index: {}]
  %s13 = sld [smem:[#allocation0]]
  $region98: #{tpu_custom_call.1} parent=0
    _
  %s15 = ssub.s32 1, %s13
  %s16 = scalar_select 0, %s15, %s13
  %v17 = vstv %s11
  %18 = vst [vmem:[#allocation2] sm:$0x1] %v17
  $region1: #{tpu_custom_call.1} parent=0
    #allocation3 [shape = 'u8[1024]{0}', space=vmem, size = 0x400, scoped, tag = 'input window, operand 1, single buffered']
    #allocation4 [shape = 's32[1]{0}', space=sflag, size = 0x4, scoped, tag = 'scoped memory for tpu_custom_call.1']
    #allocation5 [shape = 'u8[1024]{0}', space=vmem, size = 0x400, scoped, tag = 'input window, operand 2, single buffered']
    #allocation6 [shape = 's32[1]{0}', space=sflag, size = 0x4, scoped, tag = 'scoped memory for tpu_custom_call.1']
    #allocation7 [shape = 'u8[262144]{0}', space=vmem, size = 0x40000, scoped, tag = 'input window, operand 3, single buffered']
    #allocation8 [shape = 'u8[1024]{0}', space=vmem, size = 0x400, scoped, tag = 'input window, operand 4, single buffered']
    #allocation9 [shape = 's32[1]{0}', space=sflag, size = 0x4, scoped, tag = 'scoped memory for tpu_custom_call.1']
    #allocation10 [shape = 'u8[262144]{0}', space=vmem, size = 0x40000, scoped, tag = 'input window, operand 5, single buffered']
    #allocation11 [shape = 'u8[1024]{0}', space=vmem, size = 0x400, scoped, tag = 'input window, operand 6, single buffered']
    #allocation12 [shape = 's32[1]{0}', space=sflag, size = 0x4, scoped, tag = 'scoped memory for tpu_custom_call.1']
    #allocation13 [shape = 'u8[1024]{0}', space=vmem, size = 0x400, scoped, tag = 'input window, operand 7, single buffered']
    #allocation14 [shape = 'u8[1572864]{0}', space=vmem, size = 0x180000, scoped, tag = 'input window, operand 8, single buffered']
    #allocation15 [shape = 's32[1]{0}', space=sflag, size = 0x4, scoped, tag = 'scoped memory for tpu_custom_call.1']
    #allocation16 [shape = 'u8[2048]{0}', space=vmem, size = 0x800, scoped, tag = 'input window, operand 9, single buffered']
    #allocation17 [shape = 'u8[2048]{0}', space=vmem, size = 0x800, scoped, tag = 'input window, operand 10, single buffered']
    #allocation18 [shape = 's32[1]{0}', space=sflag, size = 0x4, scoped, tag = 'scoped memory for tpu_custom_call.1']
    %19 = vsyncpa [#allocation4], 0
    %20 = vsyncpa [#allocation6], 0
    %21 = vsyncpa [#allocation9], 0
    %22 = vsyncpa [#allocation12], 0
    %23 = vsyncpa [#allocation15], 0
    %24 = vsyncpa [#allocation18], 0
    // Predicated region
    $region2: #{tpu_custom_call.1} parent=1 // pred_check
      _
    $region3: #{tpu_custom_call.1} parent=1 // pred_check_branch
      %26 = sbr.rel (0) target = $region5
    $region4: #{tpu_custom_call.1} parent=1 // pred_region
      _
    $region5: #{tpu_custom_call.1} parent=1 // pred_fallthru
      _
    // Predicated region
    $region6: #{tpu_custom_call.1} parent=1 // pred_check
      _
    $region7: #{tpu_custom_call.1} parent=1 // pred_check_branch
      %28 = sbr.rel (0) target = $region9
    $region8: #{tpu_custom_call.1} parent=1 // pred_region
      %s30 = ssub.s32 32, 32
      %31 = vsyncadd [#allocation4], %s30
      %s33 = sshll.u32 [#allocation3], 4
      %s34 = int_to_ptr.vmem [resolvable:$true] %s33
      %36 = dma.hbm_to_vmem [thread:$0]  %s1, 32, %s34, [#allocation4]
    $region9: #{tpu_custom_call.1} parent=1 // pred_fallthru
      _
    // Predicated region
    $region10: #{tpu_custom_call.1} parent=1 // pred_check
      _
    $region11: #{tpu_custom_call.1} parent=1 // pred_check_branch
      %38 = sbr.rel (0) target = $region13
    $region12: #{tpu_custom_call.1} parent=1 // pred_region
      %s40 = ssub.s32 32, 32
      %41 = vsyncadd [#allocation6], %s40
      %s43 = sshll.u32 [#allocation5], 4
      %s44 = int_to_ptr.vmem [resolvable:$true] %s43
      %46 = dma.hbm_to_vmem [thread:$0]  %s2, 32, %s44, [#allocation6]
    $region13: #{tpu_custom_call.1} parent=1 // pred_fallthru
      _
    // Predicated region
    $region14: #{tpu_custom_call.1} parent=1 // pred_check
      _
    $region15: #{tpu_custom_call.1} parent=1 // pred_check_branch
      %48 = sbr.rel (0) target = $region17
    $region16: #{tpu_custom_call.1} parent=1 // pred_region
      %s50 = ssub.s32 8192, 8192
      %51 = vsyncadd [#allocation6], %s50
      %s52 = sshll.u32 [#allocation7], 4
      %s53 = int_to_ptr.vmem [resolvable:$true] %s52
      %58 = dma.hbm_to_vmem [thread:$0]  %s3, 8192, %s53, [#allocation6], 256, 256, 16
    $region17: #{tpu_custom_call.1} parent=1 // pred_fallthru
      _
    // Predicated region
    $region18: #{tpu_custom_call.1} parent=1 // pred_check
      _
    $region19: #{tpu_custom_call.1} parent=1 // pred_check_branch
      %60 = sbr.rel (0) target = $region21
    $region20: #{tpu_custom_call.1} parent=1 // pred_region
      %s62 = ssub.s32 32, 32
      %63 = vsyncadd [#allocation9], %s62
      %s65 = sshll.u32 [#allocation8], 4
      %s66 = int_to_ptr.vmem [resolvable:$true] %s65
      %68 = dma.hbm_to_vmem [thread:$0]  %s4, 32, %s66, [#allocation9]
    $region21: #{tpu_custom_call.1} parent=1 // pred_fallthru
      _
    // Predicated region
    $region22: #{tpu_custom_call.1} parent=1 // pred_check
      _
    $region23: #{tpu_custom_call.1} parent=1 // pred_check_branch
      %70 = sbr.rel (0) target = $region25
    $region24: #{tpu_custom_call.1} parent=1 // pred_region
      %s72 = ssub.s32 8192, 8192
      %73 = vsyncadd [#allocation9], %s72
      %s74 = sshll.u32 [#allocation10], 4
      %s75 = int_to_ptr.vmem [resolvable:$true] %s74
      %80 = dma.hbm_to_vmem [thread:$0]  %s5, 8192, %s75, [#allocation9], 256, 256, 16
    $region25: #{tpu_custom_call.1} parent=1 // pred_fallthru
      _
    // Predicated region
    $region26: #{tpu_custom_call.1} parent=1 // pred_check
      _
    $region27: #{tpu_custom_call.1} parent=1 // pred_check_branch
      %82 = sbr.rel (0) target = $region29
    $region28: #{tpu_custom_call.1} parent=1 // pred_region
      %s84 = ssub.s32 32, 32
      %85 = vsyncadd [#allocation12], %s84
      %s87 = sshll.u32 [#allocation11], 4
      %s88 = int_to_ptr.vmem [resolvable:$true] %s87
      %90 = dma.hbm_to_vmem [thread:$0]  %s6, 32, %s88, [#allocation12]
    $region29: #{tpu_custom_call.1} parent=1 // pred_fallthru
      _
    // Predicated region
    $region30: #{tpu_custom_call.1} parent=1 // pred_check
      _
    $region31: #{tpu_custom_call.1} parent=1 // pred_check_branch
      %92 = sbr.rel (0) target = $region33
    $region32: #{tpu_custom_call.1} parent=1 // pred_region
      %s94 = ssub.s32 32, 32
      %95 = vsyncadd [#allocation12], %s94
      %s97 = sshll.u32 [#allocation13], 4
      %s98 = int_to_ptr.vmem [resolvable:$true] %s97
      %100 = dma.hbm_to_vmem [thread:$0]  %s7, 32, %s98, [#allocation12]
    $region33: #{tpu_custom_call.1} parent=1 // pred_fallthru
      _
    // Predicated region
    $region34: #{tpu_custom_call.1} parent=1 // pred_check
      _
    $region35: #{tpu_custom_call.1} parent=1 // pred_check_branch
      %102 = sbr.rel (0) target = $region37
    $region36: #{tpu_custom_call.1} parent=1 // pred_region
      %s104 = ssub.s32 49152, 49152
      %105 = vsyncadd [#allocation15], %s104
      %s106 = sshll.u32 [#allocation14], 4
      %s107 = int_to_ptr.vmem [resolvable:$true] %s106
      %112 = dma.hbm_to_vmem [thread:$0]  %s8, 49152, %s107, [#allocation15], 512, 512, 32
    $region37: #{tpu_custom_call.1} parent=1 // pred_fallthru
      _
    // Predicated region
    $region38: #{tpu_custom_call.1} parent=1 // pred_check
      _
    $region39: #{tpu_custom_call.1} parent=1 // pred_check_branch
      %114 = sbr.rel (0) target = $region41
    $region40: #{tpu_custom_call.1} parent=1 // pred_region
      %s116 = ssub.s32 64, 64
      %117 = vsyncadd [#allocation15], %s116
      %s119 = sshll.u32 [#allocation16], 4
      %s120 = int_to_ptr.vmem [resolvable:$true] %s119
      %122 = dma.hbm_to_vmem [thread:$0]  %s9, 64, %s120, [#allocation15]
    $region41: #{tpu_custom_call.1} parent=1 // pred_fallthru
      _
    // Predicated region
    $region42: #{tpu_custom_call.1} parent=1 // pred_check
      _
    $region43: #{tpu_custom_call.1} parent=1 // pred_check_branch
      %124 = sbr.rel (0) target = $region45
    $region44: #{tpu_custom_call.1} parent=1 // pred_region
      %s126 = ssub.s32 64, 64
      %127 = vsyncadd [#allocation18], %s126
      %s129 = sshll.u32 [#allocation17], 4
      %s130 = int_to_ptr.vmem [resolvable:$true] %s129
      %132 = dma.hbm_to_vmem [thread:$0]  %s10, 64, %s130, [#allocation18]
    $region45: #{tpu_custom_call.1} parent=1 // pred_fallthru
      _
    // Predicated region
    $region46: #{tpu_custom_call.1} parent=1 // pred_check
      _
    $region47: #{tpu_custom_call.1} parent=1 // pred_check_branch
      %134 = sbr.rel (0) target = $region49
    $region48: #{tpu_custom_call.1} parent=1 // pred_region
      _
    $region49: #{tpu_custom_call.1} parent=1 // pred_fallthru
      _
    // Predicated region
    $region50: #{tpu_custom_call.1} parent=1 // pred_check
      _
    $region51: #{tpu_custom_call.1} parent=1 // pred_check_branch
      %136 = sbr.rel (0) target = $region53
    $region52: #{tpu_custom_call.1} parent=1 // pred_region
      %137 = dma.done [#allocation4], 32
    $region53: #{tpu_custom_call.1} parent=1 // pred_fallthru
      _
    // Predicated region
    $region54: #{tpu_custom_call.1} parent=1 // pred_check
      _
    $region55: #{tpu_custom_call.1} parent=1 // pred_check_branch
      %139 = sbr.rel (0) target = $region57
    $region56: #{tpu_custom_call.1} parent=1 // pred_region
      %140 = dma.done [#allocation6], 32
    $region57: #{tpu_custom_call.1} parent=1 // pred_fallthru
      _
    // Predicated region
    $region58: #{tpu_custom_call.1} parent=1 // pred_check
      _
    $region59: #{tpu_custom_call.1} parent=1 // pred_check_branch
      %142 = sbr.rel (0) target = $region61
    $region60: #{tpu_custom_call.1} parent=1 // pred_region
      %143 = dma.done [#allocation6], 8192
    $region61: #{tpu_custom_call.1} parent=1 // pred_fallthru
      _
    // Predicated region
    $region62: #{tpu_custom_call.1} parent=1 // pred_check
      _
    $region63: #{tpu_custom_call.1} parent=1 // pred_check_branch
      %145 = sbr.rel (0) target = $region65
    $region64: #{tpu_custom_call.1} parent=1 // pred_region
      %146 = dma.done [#allocation9], 32
    $region65: #{tpu_custom_call.1} parent=1 // pred_fallthru
      _
    // Predicated region
    $region66: #{tpu_custom_call.1} parent=1 // pred_check
      _
    $region67: #{tpu_custom_call.1} parent=1 // pred_check_branch
      %148 = sbr.rel (0) target = $region69
    $region68: #{tpu_custom_call.1} parent=1 // pred_region
      %149 = dma.done [#allocation9], 8192
    $region69: #{tpu_custom_call.1} parent=1 // pred_fallthru
      _
    // Predicated region
    $region70: #{tpu_custom_call.1} parent=1 // pred_check
      _
    $region71: #{tpu_custom_call.1} parent=1 // pred_check_branch
      %151 = sbr.rel (0) target = $region73
    $region72: #{tpu_custom_call.1} parent=1 // pred_region
      %152 = dma.done [#allocation12], 32
    $region73: #{tpu_custom_call.1} parent=1 // pred_fallthru
      _
    // Predicated region
    $region74: #{tpu_custom_call.1} parent=1 // pred_check
      _
    $region75: #{tpu_custom_call.1} parent=1 // pred_check_branch
      %154 = sbr.rel (0) target = $region77
    $region76: #{tpu_custom_call.1} parent=1 // pred_region
      %155 = dma.done [#allocation12], 32
    $region77: #{tpu_custom_call.1} parent=1 // pred_fallthru
      _
    // Predicated region
    $region78: #{tpu_custom_call.1} parent=1 // pred_check
      _
    $region79: #{tpu_custom_call.1} parent=1 // pred_check_branch
      %157 = sbr.rel (0) target = $region81
    $region80: #{tpu_custom_call.1} parent=1 // pred_region
      %158 = dma.done [#allocation15], 49152
    $region81: #{tpu_custom_call.1} parent=1 // pred_fallthru
      _
    // Predicated region
    $region82: #{tpu_custom_call.1} parent=1 // pred_check
      _
    $region83: #{tpu_custom_call.1} parent=1 // pred_check_branch
      %160 = sbr.rel (0) target = $region85
    $region84: #{tpu_custom_call.1} parent=1 // pred_region
      %161 = dma.done [#allocation15], 64
    $region85: #{tpu_custom_call.1} parent=1 // pred_fallthru
      _
    // Predicated region
    $region86: #{tpu_custom_call.1} parent=1 // pred_check
      _
    $region87: #{tpu_custom_call.1} parent=1 // pred_check_branch
      %163 = sbr.rel (0) target = $region89
    $region88: #{tpu_custom_call.1} parent=1 // pred_region
      %164 = dma.done [#allocation18], 64
    $region89: #{tpu_custom_call.1} parent=1 // pred_fallthru
      _
    %v165 = vld [vmem:[%s0] sm:$0xff]
    %v166 = vld [vmem:[#allocation3] sm:$0x3]
    %168 = vset.pattern.permute.xlu0 0
    %169 = vperm.xlu0 %168, %v165
    %v170 = vpop.permute.xlu0 %169
    %v173 = vlaneseq
    %v174 = vshrl.u32 %v173, 7
    %v175 = vsub.s32 0, %v174
    %v176 = vrot.slane %v166, %v175
    %v177 = vlaneseq
    %v178 = vshrl.u32 %v177, 7
    %v179 = vsub.s32 1, %v178
    %v180 = vrot.slane %v166, %v179
    %v183 = vmul.f32 %v170, %v176
    %v184 = vmul.f32 %v170, %v180
    %v185 = vld [vmem:[#allocation5] sm:$0x3]
    %v187 = vlaneseq
    %v188 = vshrl.u32 %v187, 7
    %v189 = vsub.s32 0, %v188
    %v190 = vrot.slane %v185, %v189
    %v191 = vlaneseq
    %v192 = vshrl.u32 %v191, 7
    %v193 = vsub.s32 1, %v192
    %v194 = vrot.slane %v185, %v193
    %v197 = vadd.f32 %v183, %v190
    %v198 = vadd.f32 %v184, %v194
    %v199 = vmax.f32 %v197, 0.0
    %v200 = vmax.f32 %v198, 0.0
    %vm201 = vcmp.gt.f32.partialorder %v199, 0.0
    %vm202 = vcmp.gt.f32.partialorder %v200, 0.0
    %v203 = vsel %vm201, 1, 0
    %v204 = vsel %vm202, 1, 0
    %v205 = vcvt.s32.f32 %v203
    %v206 = vcvt.s32.f32 %v204
    %v207 = vld [vmem:[#allocation7] sm:$0xff]
    %v208 = vld [vmem:[#allocation7 + $0x8] sm:$0xff]
    %v209 = vld [vmem:[#allocation7 + $0x10] sm:$0xff]
    %v210 = vld [vmem:[#allocation7 + $0x18] sm:$0xff]
    %v211 = vld [vmem:[#allocation7 + $0x20] sm:$0xff]
    %v212 = vld [vmem:[#allocation7 + $0x28] sm:$0xff]
    %v213 = vld [vmem:[#allocation7 + $0x30] sm:$0xff]
    %v214 = vld [vmem:[#allocation7 + $0x38] sm:$0xff]
    %v215 = vld [vmem:[#allocation7 + $0x40] sm:$0xff]
    %v216 = vld [vmem:[#allocation7 + $0x48] sm:$0xff]
    %v217 = vld [vmem:[#allocation7 + $0x50] sm:$0xff]
    %v218 = vld [vmem:[#allocation7 + $0x58] sm:$0xff]
    %v219 = vld [vmem:[#allocation7 + $0x60] sm:$0xff]
    %v220 = vld [vmem:[#allocation7 + $0x68] sm:$0xff]
    %v221 = vld [vmem:[#allocation7 + $0x70] sm:$0xff]
    %v222 = vld [vmem:[#allocation7 + $0x78] sm:$0xff]
    %v223 = vld [vmem:[#allocation7 + $0x80] sm:$0xff]
    %v224 = vld [vmem:[#allocation7 + $0x88] sm:$0xff]
    %v225 = vld [vmem:[#allocation7 + $0x90] sm:$0xff]
    %v226 = vld [vmem:[#allocation7 + $0x98] sm:$0xff]
    %v227 = vld [vmem:[#allocation7 + $0xa0] sm:$0xff]
    %v228 = vld [vmem:[#allocation7 + $0xa8] sm:$0xff]
    %v229 = vld [vmem:[#allocation7 + $0xb0] sm:$0xff]
    %v230 = vld [vmem:[#allocation7 + $0xb8] sm:$0xff]
    %v231 = vld [vmem:[#allocation7 + $0xc0] sm:$0xff]
    %v232 = vld [vmem:[#allocation7 + $0xc8] sm:$0xff]
    %v233 = vld [vmem:[#allocation7 + $0xd0] sm:$0xff]
    %v234 = vld [vmem:[#allocation7 + $0xd8] sm:$0xff]
    %v235 = vld [vmem:[#allocation7 + $0xe0] sm:$0xff]
    %v236 = vld [vmem:[#allocation7 + $0xe8] sm:$0xff]
    %v237 = vld [vmem:[#allocation7 + $0xf0] sm:$0xff]
    %v238 = vld [vmem:[#allocation7 + $0xf8] sm:$0xff]
    %v239 = vld [vmem:[#allocation7 + $0x100] sm:$0xff]
    %v240 = vld [vmem:[#allocation7 + $0x108] sm:$0xff]
    %v241 = vld [vmem:[#allocation7 + $0x110] sm:$0xff]
    %v242 = vld [vmem:[#allocation7 + $0x118] sm:$0xff]
    %v243 = vld [vmem:[#allocation7 + $0x120] sm:$0xff]
    %v244 = vld [vmem:[#allocation7 + $0x128] sm:$0xff]
    %v245 = vld [vmem:[#allocation7 + $0x130] sm:$0xff]
    %v246 = vld [vmem:[#allocation7 + $0x138] sm:$0xff]
    %v247 = vld [vmem:[#allocation7 + $0x140] sm:$0xff]
    %v248 = vld [vmem:[#allocation7 + $0x148] sm:$0xff]
    %v249 = vld [vmem:[#allocation7 + $0x150] sm:$0xff]
    %v250 = vld [vmem:[#allocation7 + $0x158] sm:$0xff]
    %v251 = vld [vmem:[#allocation7 + $0x160] sm:$0xff]
    %v252 = vld [vmem:[#allocation7 + $0x168] sm:$0xff]
    %v253 = vld [vmem:[#allocation7 + $0x170] sm:$0xff]
    %v254 = vld [vmem:[#allocation7 + $0x178] sm:$0xff]
    %v255 = vld [vmem:[#allocation7 + $0x180] sm:$0xff]
    %v256 = vld [vmem:[#allocation7 + $0x188] sm:$0xff]
    %v257 = vld [vmem:[#allocation7 + $0x190] sm:$0xff]
    %v258 = vld [vmem:[#allocation7 + $0x198] sm:$0xff]
    %v259 = vld [vmem:[#allocation7 + $0x1a0] sm:$0xff]
    %v260 = vld [vmem:[#allocation7 + $0x1a8] sm:$0xff]
    %v261 = vld [vmem:[#allocation7 + $0x1b0] sm:$0xff]
    %v262 = vld [vmem:[#allocation7 + $0x1b8] sm:$0xff]
    %v263 = vld [vmem:[#allocation7 + $0x1c0] sm:$0xff]
    %v264 = vld [vmem:[#allocation7 + $0x1c8] sm:$0xff]
    %v265 = vld [vmem:[#allocation7 + $0x1d0] sm:$0xff]
    %v266 = vld [vmem:[#allocation7 + $0x1d8] sm:$0xff]
    %v267 = vld [vmem:[#allocation7 + $0x1e0] sm:$0xff]
    %v268 = vld [vmem:[#allocation7 + $0x1e8] sm:$0xff]
    %v269 = vld [vmem:[#allocation7 + $0x1f0] sm:$0xff]
    %v270 = vld [vmem:[#allocation7 + $0x1f8] sm:$0xff]
    %v271 = vld [vmem:[#allocation8] sm:$0x3]
    %v273 = vlaneseq
    %v274 = vshrl.u32 %v273, 7
    %v275 = vsub.s32 0, %v274
    %v276 = vrot.slane %v271, %v275
    %v277 = vlaneseq
    %v278 = vshrl.u32 %v277, 7
    %v279 = vsub.s32 1, %v278
    %v280 = vrot.slane %v271, %v279
    %283 = vmatprep.subr.mxu0 %v238
    %284 = vmatpush1.msra.mxu0 %v237
    %285 = vmatprep.subr.mxu0 %v236
    %286 = vmatpush1.msra.mxu0 %v235
    %287 = vmatprep.subr.mxu0 %v234
    %288 = vmatpush1.msra.mxu0 %v233
    %289 = vmatprep.subr.mxu0 %v232
    %290 = vmatpush1.msra.mxu0 %v231
    %291 = vmatprep.subr.mxu0 %v230
    %292 = vmatpush1.msra.mxu0 %v229
    %293 = vmatprep.subr.mxu0 %v228
    %294 = vmatpush1.msra.mxu0 %v227
    %295 = vmatprep.subr.mxu0 %v226
    %296 = vmatpush1.msra.mxu0 %v225
    %297 = vmatprep.subr.mxu0 %v224
    %298 = vmatpush1.msra.mxu0 %v223
    %299 = vmatprep.subr.mxu0 %v222
    %300 = vmatpush1.msra.mxu0 %v221
    %301 = vmatprep.subr.mxu0 %v220
    %302 = vmatpush1.msra.mxu0 %v219
    %303 = vmatprep.subr.mxu0 %v218
    %304 = vmatpush1.msra.mxu0 %v217
    %305 = vmatprep.subr.mxu0 %v216
    %306 = vmatpush1.msra.mxu0 %v215
    %307 = vmatprep.subr.mxu0 %v214
    %308 = vmatpush1.msra.mxu0 %v213
    %309 = vmatprep.subr.mxu0 %v212
    %310 = vmatpush1.msra.mxu0 %v211
    %311 = vmatprep.subr.mxu0 %v210
    %312 = vmatpush1.msra.mxu0 %v209
    %313 = vmatprep.subr.mxu0 %v208
    %314 = vmatpush1.msra.mxu0 %v207
    %315 = vmatprep.subr.mxu0 %v270
    %316 = vmatpush2.msra.mxu0 %v269
    %317 = vmatprep.subr.mxu0 %v268
    %318 = vmatpush2.msra.mxu0 %v267
    %319 = vmatprep.subr.mxu0 %v266
    %320 = vmatpush2.msra.mxu0 %v265
    %321 = vmatprep.subr.mxu0 %v264
    %322 = vmatpush2.msra.mxu0 %v263
    %323 = vmatprep.subr.mxu0 %v262
    %324 = vmatpush2.msra.mxu0 %v261
    %325 = vmatprep.subr.mxu0 %v260
    %326 = vmatpush2.msra.mxu0 %v259
    %327 = vmatprep.subr.mxu0 %v258
    %328 = vmatpush2.msra.mxu0 %v257
    %329 = vmatprep.subr.mxu0 %v256
    %330 = vmatpush2.msra.mxu0 %v255
    %331 = vmatprep.subr.mxu0 %v254
    %332 = vmatpush2.msra.mxu0 %v253
    %333 = vmatprep.subr.mxu0 %v252
    %334 = vmatpush2.msra.mxu0 %v251
    %335 = vmatprep.subr.mxu0 %v250
    %336 = vmatpush2.msra.mxu0 %v249
    %337 = vmatprep.subr.mxu0 %v248
    %338 = vmatpush2.msra.mxu0 %v247
    %339 = vmatprep.subr.mxu0 %v246
    %340 = vmatpush2.msra.mxu0 %v245
    %341 = vmatprep.subr.mxu0 %v244
    %342 = vmatpush2.msra.mxu0 %v243
    %343 = vmatprep.subr.mxu0 %v242
    %344 = vmatpush2.msra.mxu0 %v241
    %345 = vmatprep.subr.mxu0 %v240
    %346 = vmatpush2.msra.mxu0 %v239
    %347 = vmatprep.mubr.f32.mxu0 %v200
    %348 = vmatmul.mubr.f32.gmra.mxu0 %v199
    %v349 = vpop.f32.mrf.mxu0
    %v350 = vadd.f32 %v276, %v349
    %v351 = vpop.f32.mrf.mxu0
    %v352 = vadd.f32 %v280, %v351
    %353 = vdwg.mxu0
    %v354 = vmax.f32 %v350, 0.0
    %v355 = vmax.f32 %v352, 0.0
    %vm356 = vcmp.gt.f32.partialorder %v354, 0.0
    %vm357 = vcmp.gt.f32.partialorder %v355, 0.0
    %v358 = vsel %vm356, 1, 0
    %v359 = vsel %vm357, 1, 0
    %v360 = vcvt.s32.f32 %v358
    %v361 = vcvt.s32.f32 %v359
    %v362 = vld [vmem:[#allocation10] sm:$0xff]
    %v363 = vld [vmem:[#allocation10 + $0x8] sm:$0xff]
    %v364 = vld [vmem:[#allocation10 + $0x10] sm:$0xff]
    %v365 = vld [vmem:[#allocation10 + $0x18] sm:$0xff]
    %v366 = vld [vmem:[#allocation10 + $0x20] sm:$0xff]
    %v367 = vld [vmem:[#allocation10 + $0x28] sm:$0xff]
    %v368 = vld [vmem:[#allocation10 + $0x30] sm:$0xff]
    %v369 = vld [vmem:[#allocation10 + $0x38] sm:$0xff]
    %v370 = vld [vmem:[#allocation10 + $0x40] sm:$0xff]
    %v371 = vld [vmem:[#allocation10 + $0x48] sm:$0xff]
    %v372 = vld [vmem:[#allocation10 + $0x50] sm:$0xff]
    %v373 = vld [vmem:[#allocation10 + $0x58] sm:$0xff]
    %v374 = vld [vmem:[#allocation10 + $0x60] sm:$0xff]
    %v375 = vld [vmem:[#allocation10 + $0x68] sm:$0xff]
    %v376 = vld [vmem:[#allocation10 + $0x70] sm:$0xff]
    %v377 = vld [vmem:[#allocation10 + $0x78] sm:$0xff]
    %v378 = vld [vmem:[#allocation10 + $0x80] sm:$0xff]
    %v379 = vld [vmem:[#allocation10 + $0x88] sm:$0xff]
    %v380 = vld [vmem:[#allocation10 + $0x90] sm:$0xff]
    %v381 = vld [vmem:[#allocation10 + $0x98] sm:$0xff]
    %v382 = vld [vmem:[#allocation10 + $0xa0] sm:$0xff]
    %v383 = vld [vmem:[#allocation10 + $0xa8] sm:$0xff]
    %v384 = vld [vmem:[#allocation10 + $0xb0] sm:$0xff]
    %v385 = vld [vmem:[#allocation10 + $0xb8] sm:$0xff]
    %v386 = vld [vmem:[#allocation10 + $0xc0] sm:$0xff]
    %v387 = vld [vmem:[#allocation10 + $0xc8] sm:$0xff]
    %v388 = vld [vmem:[#allocation10 + $0xd0] sm:$0xff]
    %v389 = vld [vmem:[#allocation10 + $0xd8] sm:$0xff]
    %v390 = vld [vmem:[#allocation10 + $0xe0] sm:$0xff]
    %v391 = vld [vmem:[#allocation10 + $0xe8] sm:$0xff]
    %v392 = vld [vmem:[#allocation10 + $0xf0] sm:$0xff]
    %v393 = vld [vmem:[#allocation10 + $0xf8] sm:$0xff]
    %v394 = vld [vmem:[#allocation10 + $0x100] sm:$0xff]
    %v395 = vld [vmem:[#allocation10 + $0x108] sm:$0xff]
    %v396 = vld [vmem:[#allocation10 + $0x110] sm:$0xff]
    %v397 = vld [vmem:[#allocation10 + $0x118] sm:$0xff]
    %v398 = vld [vmem:[#allocation10 + $0x120] sm:$0xff]
    %v399 = vld [vmem:[#allocation10 + $0x128] sm:$0xff]
    %v400 = vld [vmem:[#allocation10 + $0x130] sm:$0xff]
    %v401 = vld [vmem:[#allocation10 + $0x138] sm:$0xff]
    %v402 = vld [vmem:[#allocation10 + $0x140] sm:$0xff]
    %v403 = vld [vmem:[#allocation10 + $0x148] sm:$0xff]
    %v404 = vld [vmem:[#allocation10 + $0x150] sm:$0xff]
    %v405 = vld [vmem:[#allocation10 + $0x158] sm:$0xff]
    %v406 = vld [vmem:[#allocation10 + $0x160] sm:$0xff]
    %v407 = vld [vmem:[#allocation10 + $0x168] sm:$0xff]
    %v408 = vld [vmem:[#allocation10 + $0x170] sm:$0xff]
    %v409 = vld [vmem:[#allocation10 + $0x178] sm:$0xff]
    %v410 = vld [vmem:[#allocation10 + $0x180] sm:$0xff]
    %v411 = vld [vmem:[#allocation10 + $0x188] sm:$0xff]
    %v412 = vld [vmem:[#allocation10 + $0x190] sm:$0xff]
    %v413 = vld [vmem:[#allocation10 + $0x198] sm:$0xff]
    %v414 = vld [vmem:[#allocation10 + $0x1a0] sm:$0xff]
    %v415 = vld [vmem:[#allocation10 + $0x1a8] sm:$0xff]
    %v416 = vld [vmem:[#allocation10 + $0x1b0] sm:$0xff]
    %v417 = vld [vmem:[#allocation10 + $0x1b8] sm:$0xff]
    %v418 = vld [vmem:[#allocation10 + $0x1c0] sm:$0xff]
    %v419 = vld [vmem:[#allocation10 + $0x1c8] sm:$0xff]
    %v420 = vld [vmem:[#allocation10 + $0x1d0] sm:$0xff]
    %v421 = vld [vmem:[#allocation10 + $0x1d8] sm:$0xff]
    %v422 = vld [vmem:[#allocation10 + $0x1e0] sm:$0xff]
    %v423 = vld [vmem:[#allocation10 + $0x1e8] sm:$0xff]
    %v424 = vld [vmem:[#allocation10 + $0x1f0] sm:$0xff]
    %v425 = vld [vmem:[#allocation10 + $0x1f8] sm:$0xff]
    %v426 = vld [vmem:[#allocation11] sm:$0x3]
    %v428 = vlaneseq
    %v429 = vshrl.u32 %v428, 7
    %v430 = vsub.s32 0, %v429
    %v431 = vrot.slane %v426, %v430
    %v432 = vlaneseq
    %v433 = vshrl.u32 %v432, 7
    %v434 = vsub.s32 1, %v433
    %v435 = vrot.slane %v426, %v434
    %438 = vmatprep.subr.mxu0 %v393
    %439 = vmatpush1.msra.mxu0 %v392
    %440 = vmatprep.subr.mxu0 %v391
    %441 = vmatpush1.msra.mxu0 %v390
    %442 = vmatprep.subr.mxu0 %v389
    %443 = vmatpush1.msra.mxu0 %v388
    %444 = vmatprep.subr.mxu0 %v387
    %445 = vmatpush1.msra.mxu0 %v386
    %446 = vmatprep.subr.mxu0 %v385
    %447 = vmatpush1.msra.mxu0 %v384
    %448 = vmatprep.subr.mxu0 %v383
    %449 = vmatpush1.msra.mxu0 %v382
    %450 = vmatprep.subr.mxu0 %v381
    %451 = vmatpush1.msra.mxu0 %v380
    %452 = vmatprep.subr.mxu0 %v379
    %453 = vmatpush1.msra.mxu0 %v378
    %454 = vmatprep.subr.mxu0 %v377
    %455 = vmatpush1.msra.mxu0 %v376
    %456 = vmatprep.subr.mxu0 %v375
    %457 = vmatpush1.msra.mxu0 %v374
    %458 = vmatprep.subr.mxu0 %v373
    %459 = vmatpush1.msra.mxu0 %v372
    %460 = vmatprep.subr.mxu0 %v371
    %461 = vmatpush1.msra.mxu0 %v370
    %462 = vmatprep.subr.mxu0 %v369
    %463 = vmatpush1.msra.mxu0 %v368
    %464 = vmatprep.subr.mxu0 %v367
    %465 = vmatpush1.msra.mxu0 %v366
    %466 = vmatprep.subr.mxu0 %v365
    %467 = vmatpush1.msra.mxu0 %v364
    %468 = vmatprep.subr.mxu0 %v363
    %469 = vmatpush1.msra.mxu0 %v362
    %470 = vmatprep.subr.mxu0 %v425
    %471 = vmatpush2.msra.mxu0 %v424
    %472 = vmatprep.subr.mxu0 %v423
    %473 = vmatpush2.msra.mxu0 %v422
    %474 = vmatprep.subr.mxu0 %v421
    %475 = vmatpush2.msra.mxu0 %v420
    %476 = vmatprep.subr.mxu0 %v419
    %477 = vmatpush2.msra.mxu0 %v418
    %478 = vmatprep.subr.mxu0 %v417
    %479 = vmatpush2.msra.mxu0 %v416
    %480 = vmatprep.subr.mxu0 %v415
    %481 = vmatpush2.msra.mxu0 %v414
    %482 = vmatprep.subr.mxu0 %v413
    %483 = vmatpush2.msra.mxu0 %v412
    %484 = vmatprep.subr.mxu0 %v411
    %485 = vmatpush2.msra.mxu0 %v410
    %486 = vmatprep.subr.mxu0 %v409
    %487 = vmatpush2.msra.mxu0 %v408
    %488 = vmatprep.subr.mxu0 %v407
    %489 = vmatpush2.msra.mxu0 %v406
    %490 = vmatprep.subr.mxu0 %v405
    %491 = vmatpush2.msra.mxu0 %v404
    %492 = vmatprep.subr.mxu0 %v403
    %493 = vmatpush2.msra.mxu0 %v402
    %494 = vmatprep.subr.mxu0 %v401
    %495 = vmatpush2.msra.mxu0 %v400
    %496 = vmatprep.subr.mxu0 %v399
    %497 = vmatpush2.msra.mxu0 %v398
    %498 = vmatprep.subr.mxu0 %v397
    %499 = vmatpush2.msra.mxu0 %v396
    %500 = vmatprep.subr.mxu0 %v395
    %501 = vmatpush2.msra.mxu0 %v394
    %502 = vmatprep.mubr.f32.mxu0 %v355
    %503 = vmatmul.mubr.f32.gmra.mxu0 %v354
    %v504 = vpop.f32.mrf.mxu0
    %v505 = vadd.f32 %v431, %v504
    %v506 = vpop.f32.mrf.mxu0
    %v507 = vadd.f32 %v435, %v506
    %508 = vdwg.mxu0
    %v509 = vmax.f32 %v505, 0.0
    %v510 = vmax.f32 %v507, 0.0
    %vm511 = vcmp.gt.f32.partialorder %v509, 0.0
    %vm512 = vcmp.gt.f32.partialorder %v510, 0.0
    %v513 = vsel %vm511, 1, 0
    %v514 = vsel %vm512, 1, 0
    %v515 = vcvt.s32.f32 %v513
    %v516 = vcvt.s32.f32 %v514
    %v517 = vld [vmem:[#allocation13] sm:$0x3]
    %v519 = vlaneseq
    %v520 = vshrl.u32 %v519, 7
    %v521 = vsub.s32 0, %v520
    %v522 = vrot.slane %v517, %v521
    %v523 = vlaneseq
    %v524 = vshrl.u32 %v523, 7
    %v525 = vsub.s32 1, %v524
    %v526 = vrot.slane %v517, %v525
    %v529 = vmul.f32 %v509, %v522
    %v530 = vmul.f32 %v510, %v526
    %v531 = vadd.f32 %v529, %v530
    %532 = vadd.xlane.f32.xlu0 %v531
    %v533 = vpop.xlane.xlu0 %532
    %v534 = vld [vmem:[#allocation14] sm:$0xff]
    %v535 = vld [vmem:[#allocation14 + $0x8] sm:$0xff]
    %v536 = vld [vmem:[#allocation14 + $0x10] sm:$0xff]
    %v537 = vld [vmem:[#allocation14 + $0x18] sm:$0xff]
    %v538 = vld [vmem:[#allocation14 + $0x20] sm:$0xff]
    %v539 = vld [vmem:[#allocation14 + $0x28] sm:$0xff]
    %v540 = vld [vmem:[#allocation14 + $0x30] sm:$0xff]
    %v541 = vld [vmem:[#allocation14 + $0x38] sm:$0xff]
    %v542 = vld [vmem:[#allocation14 + $0x40] sm:$0xff]
    %v543 = vld [vmem:[#allocation14 + $0x48] sm:$0xff]
    %v544 = vld [vmem:[#allocation14 + $0x50] sm:$0xff]
    %v545 = vld [vmem:[#allocation14 + $0x58] sm:$0xff]
    %v546 = vld [vmem:[#allocation14 + $0x60] sm:$0xff]
    %v547 = vld [vmem:[#allocation14 + $0x68] sm:$0xff]
    %v548 = vld [vmem:[#allocation14 + $0x70] sm:$0xff]
    %v549 = vld [vmem:[#allocation14 + $0x78] sm:$0xff]
    %v550 = vld [vmem:[#allocation14 + $0x80] sm:$0xff]
    %v551 = vld [vmem:[#allocation14 + $0x88] sm:$0xff]
    %v552 = vld [vmem:[#allocation14 + $0x90] sm:$0xff]
    %v553 = vld [vmem:[#allocation14 + $0x98] sm:$0xff]
    %v554 = vld [vmem:[#allocation14 + $0xa0] sm:$0xff]
    %v555 = vld [vmem:[#allocation14 + $0xa8] sm:$0xff]
    %v556 = vld [vmem:[#allocation14 + $0xb0] sm:$0xff]
    %v557 = vld [vmem:[#allocation14 + $0xb8] sm:$0xff]
    %v558 = vld [vmem:[#allocation14 + $0xc0] sm:$0xff]
    %v559 = vld [vmem:[#allocation14 + $0xc8] sm:$0xff]
    %v560 = vld [vmem:[#allocation14 + $0xd0] sm:$0xff]
    %v561 = vld [vmem:[#allocation14 + $0xd8] sm:$0xff]
    %v562 = vld [vmem:[#allocation14 + $0xe0] sm:$0xff]
    %v563 = vld [vmem:[#allocation14 + $0xe8] sm:$0xff]
    %v564 = vld [vmem:[#allocation14 + $0xf0] sm:$0xff]
    %v565 = vld [vmem:[#allocation14 + $0xf8] sm:$0xff]
    %v566 = vld [vmem:[#allocation14 + $0x100] sm:$0xff]
    %v567 = vld [vmem:[#allocation14 + $0x108] sm:$0xff]
    %v568 = vld [vmem:[#allocation14 + $0x110] sm:$0xff]
    %v569 = vld [vmem:[#allocation14 + $0x118] sm:$0xff]
    %v570 = vld [vmem:[#allocation14 + $0x120] sm:$0xff]
    %v571 = vld [vmem:[#allocation14 + $0x128] sm:$0xff]
    %v572 = vld [vmem:[#allocation14 + $0x130] sm:$0xff]
    %v573 = vld [vmem:[#allocation14 + $0x138] sm:$0xff]
    %v574 = vld [vmem:[#allocation14 + $0x140] sm:$0xff]
    %v575 = vld [vmem:[#allocation14 + $0x148] sm:$0xff]
    %v576 = vld [vmem:[#allocation14 + $0x150] sm:$0xff]
    %v577 = vld [vmem:[#allocation14 + $0x158] sm:$0xff]
    %v578 = vld [vmem:[#allocation14 + $0x160] sm:$0xff]
    %v579 = vld [vmem:[#allocation14 + $0x168] sm:$0xff]
    %v580 = vld [vmem:[#allocation14 + $0x170] sm:$0xff]
    %v581 = vld [vmem:[#allocation14 + $0x178] sm:$0xff]
    %v582 = vld [vmem:[#allocation14 + $0x180] sm:$0xff]
    %v583 = vld [vmem:[#allocation14 + $0x188] sm:$0xff]
    %v584 = vld [vmem:[#allocation14 + $0x190] sm:$0xff]
    %v585 = vld [vmem:[#allocation14 + $0x198] sm:$0xff]
    %v586 = vld [vmem:[#allocation14 + $0x1a0] sm:$0xff]
    %v587 = vld [vmem:[#allocation14 + $0x1a8] sm:$0xff]
    %v588 = vld [vmem:[#allocation14 + $0x1b0] sm:$0xff]
    %v589 = vld [vmem:[#allocation14 + $0x1b8] sm:$0xff]
    %v590 = vld [vmem:[#allocation14 + $0x1c0] sm:$0xff]
    %v591 = vld [vmem:[#allocation14 + $0x1c8] sm:$0xff]
    %v592 = vld [vmem:[#allocation14 + $0x1d0] sm:$0xff]
    %v593 = vld [vmem:[#allocation14 + $0x1d8] sm:$0xff]
    %v594 = vld [vmem:[#allocation14 + $0x1e0] sm:$0xff]
    %v595 = vld [vmem:[#allocation14 + $0x1e8] sm:$0xff]
    %v596 = vld [vmem:[#allocation14 + $0x1f0] sm:$0xff]
    %v597 = vld [vmem:[#allocation14 + $0x1f8] sm:$0xff]
    %v598 = vld [vmem:[#allocation14 + $0x200] sm:$0xff]
    %v599 = vld [vmem:[#allocation14 + $0x208] sm:$0xff]
    %v600 = vld [vmem:[#allocation14 + $0x210] sm:$0xff]
    %v601 = vld [vmem:[#allocation14 + $0x218] sm:$0xff]
    %v602 = vld [vmem:[#allocation14 + $0x220] sm:$0xff]
    %v603 = vld [vmem:[#allocation14 + $0x228] sm:$0xff]
    %v604 = vld [vmem:[#allocation14 + $0x230] sm:$0xff]
    %v605 = vld [vmem:[#allocation14 + $0x238] sm:$0xff]
    %v606 = vld [vmem:[#allocation14 + $0x240] sm:$0xff]
    %v607 = vld [vmem:[#allocation14 + $0x248] sm:$0xff]
    %v608 = vld [vmem:[#allocation14 + $0x250] sm:$0xff]
    %v609 = vld [vmem:[#allocation14 + $0x258] sm:$0xff]
    %v610 = vld [vmem:[#allocation14 + $0x260] sm:$0xff]
    %v611 = vld [vmem:[#allocation14 + $0x268] sm:$0xff]
    %v612 = vld [vmem:[#allocation14 + $0x270] sm:$0xff]
    %v613 = vld [vmem:[#allocation14 + $0x278] sm:$0xff]
    %v614 = vld [vmem:[#allocation14 + $0x280] sm:$0xff]
    %v615 = vld [vmem:[#allocation14 + $0x288] sm:$0xff]
    %v616 = vld [vmem:[#allocation14 + $0x290] sm:$0xff]
    %v617 = vld [vmem:[#allocation14 + $0x298] sm:$0xff]
    %v618 = vld [vmem:[#allocation14 + $0x2a0] sm:$0xff]
    %v619 = vld [vmem:[#allocation14 + $0x2a8] sm:$0xff]
    %v620 = vld [vmem:[#allocation14 + $0x2b0] sm:$0xff]
    %v621 = vld [vmem:[#allocation14 + $0x2b8] sm:$0xff]
    %v622 = vld [vmem:[#allocation14 + $0x2c0] sm:$0xff]
    %v623 = vld [vmem:[#allocation14 + $0x2c8] sm:$0xff]
    %v624 = vld [vmem:[#allocation14 + $0x2d0] sm:$0xff]
    %v625 = vld [vmem:[#allocation14 + $0x2d8] sm:$0xff]
    %v626 = vld [vmem:[#allocation14 + $0x2e0] sm:$0xff]
    %v627 = vld [vmem:[#allocation14 + $0x2e8] sm:$0xff]
    %v628 = vld [vmem:[#allocation14 + $0x2f0] sm:$0xff]
    %v629 = vld [vmem:[#allocation14 + $0x2f8] sm:$0xff]
    %v630 = vld [vmem:[#allocation14 + $0x300] sm:$0xff]
    %v631 = vld [vmem:[#allocation14 + $0x308] sm:$0xff]
    %v632 = vld [vmem:[#allocation14 + $0x310] sm:$0xff]
    %v633 = vld [vmem:[#allocation14 + $0x318] sm:$0xff]
    %v634 = vld [vmem:[#allocation14 + $0x320] sm:$0xff]
    %v635 = vld [vmem:[#allocation14 + $0x328] sm:$0xff]
    %v636 = vld [vmem:[#allocation14 + $0x330] sm:$0xff]
    %v637 = vld [vmem:[#allocation14 + $0x338] sm:$0xff]
    %v638 = vld [vmem:[#allocation14 + $0x340] sm:$0xff]
    %v639 = vld [vmem:[#allocation14 + $0x348] sm:$0xff]
    %v640 = vld [vmem:[#allocation14 + $0x350] sm:$0xff]
    %v641 = vld [vmem:[#allocation14 + $0x358] sm:$0xff]
    %v642 = vld [vmem:[#allocation14 + $0x360] sm:$0xff]
    %v643 = vld [vmem:[#allocation14 + $0x368] sm:$0xff]
    %v644 = vld [vmem:[#allocation14 + $0x370] sm:$0xff]
    %v645 = vld [vmem:[#allocation14 + $0x378] sm:$0xff]
    %v646 = vld [vmem:[#allocation14 + $0x380] sm:$0xff]
    %v647 = vld [vmem:[#allocation14 + $0x388] sm:$0xff]
    %v648 = vld [vmem:[#allocation14 + $0x390] sm:$0xff]
    %v649 = vld [vmem:[#allocation14 + $0x398] sm:$0xff]
    %v650 = vld [vmem:[#allocation14 + $0x3a0] sm:$0xff]
    %v651 = vld [vmem:[#allocation14 + $0x3a8] sm:$0xff]
    %v652 = vld [vmem:[#allocation14 + $0x3b0] sm:$0xff]
    %v653 = vld [vmem:[#allocation14 + $0x3b8] sm:$0xff]
    %v654 = vld [vmem:[#allocation14 + $0x3c0] sm:$0xff]
    %v655 = vld [vmem:[#allocation14 + $0x3c8] sm:$0xff]
    %v656 = vld [vmem:[#allocation14 + $0x3d0] sm:$0xff]
    %v657 = vld [vmem:[#allocation14 + $0x3d8] sm:$0xff]
    %v658 = vld [vmem:[#allocation14 + $0x3e0] sm:$0xff]
    %v659 = vld [vmem:[#allocation14 + $0x3e8] sm:$0xff]
    %v660 = vld [vmem:[#allocation14 + $0x3f0] sm:$0xff]
    %v661 = vld [vmem:[#allocation14 + $0x3f8] sm:$0xff]
    %v662 = vld [vmem:[#allocation14 + $0x400] sm:$0xff]
    %v663 = vld [vmem:[#allocation14 + $0x408] sm:$0xff]
    %v664 = vld [vmem:[#allocation14 + $0x410] sm:$0xff]
    %v665 = vld [vmem:[#allocation14 + $0x418] sm:$0xff]
    %v666 = vld [vmem:[#allocation14 + $0x420] sm:$0xff]
    %v667 = vld [vmem:[#allocation14 + $0x428] sm:$0xff]
    %v668 = vld [vmem:[#allocation14 + $0x430] sm:$0xff]
    %v669 = vld [vmem:[#allocation14 + $0x438] sm:$0xff]
    %v670 = vld [vmem:[#allocation14 + $0x440] sm:$0xff]
    %v671 = vld [vmem:[#allocation14 + $0x448] sm:$0xff]
    %v672 = vld [vmem:[#allocation14 + $0x450] sm:$0xff]
    %v673 = vld [vmem:[#allocation14 + $0x458] sm:$0xff]
    %v674 = vld [vmem:[#allocation14 + $0x460] sm:$0xff]
    %v675 = vld [vmem:[#allocation14 + $0x468] sm:$0xff]
    %v676 = vld [vmem:[#allocation14 + $0x470] sm:$0xff]
    %v677 = vld [vmem:[#allocation14 + $0x478] sm:$0xff]
    %v678 = vld [vmem:[#allocation14 + $0x480] sm:$0xff]
    %v679 = vld [vmem:[#allocation14 + $0x488] sm:$0xff]
    %v680 = vld [vmem:[#allocation14 + $0x490] sm:$0xff]
    %v681 = vld [vmem:[#allocation14 + $0x498] sm:$0xff]
    %v682 = vld [vmem:[#allocation14 + $0x4a0] sm:$0xff]
    %v683 = vld [vmem:[#allocation14 + $0x4a8] sm:$0xff]
    %v684 = vld [vmem:[#allocation14 + $0x4b0] sm:$0xff]
    %v685 = vld [vmem:[#allocation14 + $0x4b8] sm:$0xff]
    %v686 = vld [vmem:[#allocation14 + $0x4c0] sm:$0xff]
    %v687 = vld [vmem:[#allocation14 + $0x4c8] sm:$0xff]
    %v688 = vld [vmem:[#allocation14 + $0x4d0] sm:$0xff]
    %v689 = vld [vmem:[#allocation14 + $0x4d8] sm:$0xff]
    %v690 = vld [vmem:[#allocation14 + $0x4e0] sm:$0xff]
    %v691 = vld [vmem:[#allocation14 + $0x4e8] sm:$0xff]
    %v692 = vld [vmem:[#allocation14 + $0x4f0] sm:$0xff]
    %v693 = vld [vmem:[#allocation14 + $0x4f8] sm:$0xff]
    %v694 = vld [vmem:[#allocation14 + $0x500] sm:$0xff]
    %v695 = vld [vmem:[#allocation14 + $0x508] sm:$0xff]
    %v696 = vld [vmem:[#allocation14 + $0x510] sm:$0xff]
    %v697 = vld [vmem:[#allocation14 + $0x518] sm:$0xff]
    %v698 = vld [vmem:[#allocation14 + $0x520] sm:$0xff]
    %v699 = vld [vmem:[#allocation14 + $0x528] sm:$0xff]
    %v700 = vld [vmem:[#allocation14 + $0x530] sm:$0xff]
    %v701 = vld [vmem:[#allocation14 + $0x538] sm:$0xff]
    %v702 = vld [vmem:[#allocation14 + $0x540] sm:$0xff]
    %v703 = vld [vmem:[#allocation14 + $0x548] sm:$0xff]
    %v704 = vld [vmem:[#allocation14 + $0x550] sm:$0xff]
    %v705 = vld [vmem:[#allocation14 + $0x558] sm:$0xff]
    %v706 = vld [vmem:[#allocation14 + $0x560] sm:$0xff]
    %v707 = vld [vmem:[#allocation14 + $0x568] sm:$0xff]
    %v708 = vld [vmem:[#allocation14 + $0x570] sm:$0xff]
    %v709 = vld [vmem:[#allocation14 + $0x578] sm:$0xff]
    %v710 = vld [vmem:[#allocation14 + $0x580] sm:$0xff]
    %v711 = vld [vmem:[#allocation14 + $0x588] sm:$0xff]
    %v712 = vld [vmem:[#allocation14 + $0x590] sm:$0xff]
    %v713 = vld [vmem:[#allocation14 + $0x598] sm:$0xff]
    %v714 = vld [vmem:[#allocation14 + $0x5a0] sm:$0xff]
    %v715 = vld [vmem:[#allocation14 + $0x5a8] sm:$0xff]
    %v716 = vld [vmem:[#allocation14 + $0x5b0] sm:$0xff]
    %v717 = vld [vmem:[#allocation14 + $0x5b8] sm:$0xff]
    %v718 = vld [vmem:[#allocation14 + $0x5c0] sm:$0xff]
    %v719 = vld [vmem:[#allocation14 + $0x5c8] sm:$0xff]
    %v720 = vld [vmem:[#allocation14 + $0x5d0] sm:$0xff]
    %v721 = vld [vmem:[#allocation14 + $0x5d8] sm:$0xff]
    %v722 = vld [vmem:[#allocation14 + $0x5e0] sm:$0xff]
    %v723 = vld [vmem:[#allocation14 + $0x5e8] sm:$0xff]
    %v724 = vld [vmem:[#allocation14 + $0x5f0] sm:$0xff]
    %v725 = vld [vmem:[#allocation14 + $0x5f8] sm:$0xff]
    %v726 = vld [vmem:[#allocation14 + $0x600] sm:$0xff]
    %v727 = vld [vmem:[#allocation14 + $0x608] sm:$0xff]
    %v728 = vld [vmem:[#allocation14 + $0x610] sm:$0xff]
    %v729 = vld [vmem:[#allocation14 + $0x618] sm:$0xff]
    %v730 = vld [vmem:[#allocation14 + $0x620] sm:$0xff]
    %v731 = vld [vmem:[#allocation14 + $0x628] sm:$0xff]
    %v732 = vld [vmem:[#allocation14 + $0x630] sm:$0xff]
    %v733 = vld [vmem:[#allocation14 + $0x638] sm:$0xff]
    %v734 = vld [vmem:[#allocation14 + $0x640] sm:$0xff]
    %v735 = vld [vmem:[#allocation14 + $0x648] sm:$0xff]
    %v736 = vld [vmem:[#allocation14 + $0x650] sm:$0xff]
    %v737 = vld [vmem:[#allocation14 + $0x658] sm:$0xff]
    %v738 = vld [vmem:[#allocation14 + $0x660] sm:$0xff]
    %v739 = vld [vmem:[#allocation14 + $0x668] sm:$0xff]
    %v740 = vld [vmem:[#allocation14 + $0x670] sm:$0xff]
    %v741 = vld [vmem:[#allocation14 + $0x678] sm:$0xff]
    %v742 = vld [vmem:[#allocation14 + $0x680] sm:$0xff]
    %v743 = vld [vmem:[#allocation14 + $0x688] sm:$0xff]
    %v744 = vld [vmem:[#allocation14 + $0x690] sm:$0xff]
    %v745 = vld [vmem:[#allocation14 + $0x698] sm:$0xff]
    %v746 = vld [vmem:[#allocation14 + $0x6a0] sm:$0xff]
    %v747 = vld [vmem:[#allocation14 + $0x6a8] sm:$0xff]
    %v748 = vld [vmem:[#allocation14 + $0x6b0] sm:$0xff]
    %v749 = vld [vmem:[#allocation14 + $0x6b8] sm:$0xff]
    %v750 = vld [vmem:[#allocation14 + $0x6c0] sm:$0xff]
    %v751 = vld [vmem:[#allocation14 + $0x6c8] sm:$0xff]
    %v752 = vld [vmem:[#allocation14 + $0x6d0] sm:$0xff]
    %v753 = vld [vmem:[#allocation14 + $0x6d8] sm:$0xff]
    %v754 = vld [vmem:[#allocation14 + $0x6e0] sm:$0xff]
    %v755 = vld [vmem:[#allocation14 + $0x6e8] sm:$0xff]
    %v756 = vld [vmem:[#allocation14 + $0x6f0] sm:$0xff]
    %v757 = vld [vmem:[#allocation14 + $0x6f8] sm:$0xff]
    %v758 = vld [vmem:[#allocation14 + $0x700] sm:$0xff]
    %v759 = vld [vmem:[#allocation14 + $0x708] sm:$0xff]
    %v760 = vld [vmem:[#allocation14 + $0x710] sm:$0xff]
    %v761 = vld [vmem:[#allocation14 + $0x718] sm:$0xff]
    %v762 = vld [vmem:[#allocation14 + $0x720] sm:$0xff]
    %v763 = vld [vmem:[#allocation14 + $0x728] sm:$0xff]
    %v764 = vld [vmem:[#allocation14 + $0x730] sm:$0xff]
    %v765 = vld [vmem:[#allocation14 + $0x738] sm:$0xff]
    %v766 = vld [vmem:[#allocation14 + $0x740] sm:$0xff]
    %v767 = vld [vmem:[#allocation14 + $0x748] sm:$0xff]
    %v768 = vld [vmem:[#allocation14 + $0x750] sm:$0xff]
    %v769 = vld [vmem:[#allocation14 + $0x758] sm:$0xff]
    %v770 = vld [vmem:[#allocation14 + $0x760] sm:$0xff]
    %v771 = vld [vmem:[#allocation14 + $0x768] sm:$0xff]
    %v772 = vld [vmem:[#allocation14 + $0x770] sm:$0xff]
    %v773 = vld [vmem:[#allocation14 + $0x778] sm:$0xff]
    %v774 = vld [vmem:[#allocation14 + $0x780] sm:$0xff]
    %v775 = vld [vmem:[#allocation14 + $0x788] sm:$0xff]
    %v776 = vld [vmem:[#allocation14 + $0x790] sm:$0xff]
    %v777 = vld [vmem:[#allocation14 + $0x798] sm:$0xff]
    %v778 = vld [vmem:[#allocation14 + $0x7a0] sm:$0xff]
    %v779 = vld [vmem:[#allocation14 + $0x7a8] sm:$0xff]
    %v780 = vld [vmem:[#allocation14 + $0x7b0] sm:$0xff]
    %v781 = vld [vmem:[#allocation14 + $0x7b8] sm:$0xff]
    %v782 = vld [vmem:[#allocation14 + $0x7c0] sm:$0xff]
    %v783 = vld [vmem:[#allocation14 + $0x7c8] sm:$0xff]
    %v784 = vld [vmem:[#allocation14 + $0x7d0] sm:$0xff]
    %v785 = vld [vmem:[#allocation14 + $0x7d8] sm:$0xff]
    %v786 = vld [vmem:[#allocation14 + $0x7e0] sm:$0xff]
    %v787 = vld [vmem:[#allocation14 + $0x7e8] sm:$0xff]
    %v788 = vld [vmem:[#allocation14 + $0x7f0] sm:$0xff]
    %v789 = vld [vmem:[#allocation14 + $0x7f8] sm:$0xff]
    %790 = vmatprep.subr.mxu0 %v723
    %791 = vmatpush1.msra.mxu0 %v722
    %792 = vmatprep.subr.mxu0 %v719
    %793 = vmatpush1.msra.mxu0 %v718
    %794 = vmatprep.subr.mxu0 %v715
    %795 = vmatpush1.msra.mxu0 %v714
    %796 = vmatprep.subr.mxu0 %v711
    %797 = vmatpush1.msra.mxu0 %v710
    %798 = vmatprep.subr.mxu0 %v707
    %799 = vmatpush1.msra.mxu0 %v706
    %800 = vmatprep.subr.mxu0 %v703
    %801 = vmatpush1.msra.mxu0 %v702
    %802 = vmatprep.subr.mxu0 %v699
    %803 = vmatpush1.msra.mxu0 %v698
    %804 = vmatprep.subr.mxu0 %v695
    %805 = vmatpush1.msra.mxu0 %v694
    %806 = vmatprep.subr.mxu0 %v691
    %807 = vmatpush1.msra.mxu0 %v690
    %808 = vmatprep.subr.mxu0 %v687
    %809 = vmatpush1.msra.mxu0 %v686
    %810 = vmatprep.subr.mxu0 %v683
    %811 = vmatpush1.msra.mxu0 %v682
    %812 = vmatprep.subr.mxu0 %v679
    %813 = vmatpush1.msra.mxu0 %v678
    %814 = vmatprep.subr.mxu0 %v675
    %815 = vmatpush1.msra.mxu0 %v674
    %816 = vmatprep.subr.mxu0 %v671
    %817 = vmatpush1.msra.mxu0 %v670
    %818 = vmatprep.subr.mxu0 %v667
    %819 = vmatpush1.msra.mxu0 %v666
    %820 = vmatprep.subr.mxu0 %v663
    %821 = vmatpush1.msra.mxu0 %v662
    %822 = vmatprep.subr.mxu0 %v787
    %823 = vmatpush2.msra.mxu0 %v786
    %824 = vmatprep.subr.mxu0 %v783
    %825 = vmatpush2.msra.mxu0 %v782
    %826 = vmatprep.subr.mxu0 %v779
    %827 = vmatpush2.msra.mxu0 %v778
    %828 = vmatprep.subr.mxu0 %v775
    %829 = vmatpush2.msra.mxu0 %v774
    %830 = vmatprep.subr.mxu0 %v771
    %831 = vmatpush2.msra.mxu0 %v770
    %832 = vmatprep.subr.mxu0 %v767
    %833 = vmatpush2.msra.mxu0 %v766
    %834 = vmatprep.subr.mxu0 %v763
    %835 = vmatpush2.msra.mxu0 %v762
    %836 = vmatprep.subr.mxu0 %v759
    %837 = vmatpush2.msra.mxu0 %v758
    %838 = vmatprep.subr.mxu0 %v755
    %839 = vmatpush2.msra.mxu0 %v754
    %840 = vmatprep.subr.mxu0 %v751
    %841 = vmatpush2.msra.mxu0 %v750
    %842 = vmatprep.subr.mxu0 %v747
    %843 = vmatpush2.msra.mxu0 %v746
    %844 = vmatprep.subr.mxu0 %v743
    %845 = vmatpush2.msra.mxu0 %v742
    %846 = vmatprep.subr.mxu0 %v739
    %847 = vmatpush2.msra.mxu0 %v738
    %848 = vmatprep.subr.mxu0 %v735
    %849 = vmatpush2.msra.mxu0 %v734
    %850 = vmatprep.subr.mxu0 %v731
    %851 = vmatpush2.msra.mxu0 %v730
    %852 = vmatprep.subr.mxu0 %v727
    %853 = vmatpush2.msra.mxu0 %v726
    %854 = vmatprep.mubr.f32.mxu0 %v361
    %855 = vmatmul.mubr.f32.gmra.mxu0 %v360
    %v856 = vpop.f32.mrf.mxu0
    %v857 = vadd.f32 0.0, %v856
    %v858 = vpop.f32.mrf.mxu0
    %v859 = vadd.f32 0.0, %v858
    %860 = vdwg.mxu0
    %861 = vmatprep.subr.mxu0 %v725
    %862 = vmatpush1.msra.mxu0 %v724
    %863 = vmatprep.subr.mxu0 %v721
    %864 = vmatpush1.msra.mxu0 %v720
    %865 = vmatprep.subr.mxu0 %v717
    %866 = vmatpush1.msra.mxu0 %v716
    %867 = vmatprep.subr.mxu0 %v713
    %868 = vmatpush1.msra.mxu0 %v712
    %869 = vmatprep.subr.mxu0 %v709
    %870 = vmatpush1.msra.mxu0 %v708
    %871 = vmatprep.subr.mxu0 %v705
    %872 = vmatpush1.msra.mxu0 %v704
    %873 = vmatprep.subr.mxu0 %v701
    %874 = vmatpush1.msra.mxu0 %v700
    %875 = vmatprep.subr.mxu0 %v697
    %876 = vmatpush1.msra.mxu0 %v696
    %877 = vmatprep.subr.mxu0 %v693
    %878 = vmatpush1.msra.mxu0 %v692
    %879 = vmatprep.subr.mxu0 %v689
    %880 = vmatpush1.msra.mxu0 %v688
    %881 = vmatprep.subr.mxu0 %v685
    %882 = vmatpush1.msra.mxu0 %v684
    %883 = vmatprep.subr.mxu0 %v681
    %884 = vmatpush1.msra.mxu0 %v680
    %885 = vmatprep.subr.mxu0 %v677
    %886 = vmatpush1.msra.mxu0 %v676
    %887 = vmatprep.subr.mxu0 %v673
    %888 = vmatpush1.msra.mxu0 %v672
    %889 = vmatprep.subr.mxu0 %v669
    %890 = vmatpush1.msra.mxu0 %v668
    %891 = vmatprep.subr.mxu0 %v665
    %892 = vmatpush1.msra.mxu0 %v664
    %893 = vmatprep.subr.mxu0 %v789
    %894 = vmatpush2.msra.mxu0 %v788
    %895 = vmatprep.subr.mxu0 %v785
    %896 = vmatpush2.msra.mxu0 %v784
    %897 = vmatprep.subr.mxu0 %v781
    %898 = vmatpush2.msra.mxu0 %v780
    %899 = vmatprep.subr.mxu0 %v777
    %900 = vmatpush2.msra.mxu0 %v776
    %901 = vmatprep.subr.mxu0 %v773
    %902 = vmatpush2.msra.mxu0 %v772
    %903 = vmatprep.subr.mxu0 %v769
    %904 = vmatpush2.msra.mxu0 %v768
    %905 = vmatprep.subr.mxu0 %v765
    %906 = vmatpush2.msra.mxu0 %v764
    %907 = vmatprep.subr.mxu0 %v761
    %908 = vmatpush2.msra.mxu0 %v760
    %909 = vmatprep.subr.mxu0 %v757
    %910 = vmatpush2.msra.mxu0 %v756
    %911 = vmatprep.subr.mxu0 %v753
    %912 = vmatpush2.msra.mxu0 %v752
    %913 = vmatprep.subr.mxu0 %v749
    %914 = vmatpush2.msra.mxu0 %v748
    %915 = vmatprep.subr.mxu0 %v745
    %916 = vmatpush2.msra.mxu0 %v744
    %917 = vmatprep.subr.mxu0 %v741
    %918 = vmatpush2.msra.mxu0 %v740
    %919 = vmatprep.subr.mxu0 %v737
    %920 = vmatpush2.msra.mxu0 %v736
    %921 = vmatprep.subr.mxu0 %v733
    %922 = vmatpush2.msra.mxu0 %v732
    %923 = vmatprep.subr.mxu0 %v729
    %924 = vmatpush2.msra.mxu0 %v728
    %925 = vmatprep.mubr.f32.mxu0 %v361
    %926 = vmatmul.mubr.f32.gmra.mxu0 %v360
    %v927 = vpop.f32.mrf.mxu0
    %v928 = vadd.f32 0.0, %v927
    %v929 = vpop.f32.mrf.mxu0
    %v930 = vadd.f32 0.0, %v929
    %931 = vdwg.mxu0
    %932 = vmatprep.subr.mxu0 %v595
    %933 = vmatpush1.msra.mxu0 %v594
    %934 = vmatprep.subr.mxu0 %v591
    %935 = vmatpush1.msra.mxu0 %v590
    %936 = vmatprep.subr.mxu0 %v587
    %937 = vmatpush1.msra.mxu0 %v586
    %938 = vmatprep.subr.mxu0 %v583
    %939 = vmatpush1.msra.mxu0 %v582
    %940 = vmatprep.subr.mxu0 %v579
    %941 = vmatpush1.msra.mxu0 %v578
    %942 = vmatprep.subr.mxu0 %v575
    %943 = vmatpush1.msra.mxu0 %v574
    %944 = vmatprep.subr.mxu0 %v571
    %945 = vmatpush1.msra.mxu0 %v570
    %946 = vmatprep.subr.mxu0 %v567
    %947 = vmatpush1.msra.mxu0 %v566
    %948 = vmatprep.subr.mxu0 %v563
    %949 = vmatpush1.msra.mxu0 %v562
    %950 = vmatprep.subr.mxu0 %v559
    %951 = vmatpush1.msra.mxu0 %v558
    %952 = vmatprep.subr.mxu0 %v555
    %953 = vmatpush1.msra.mxu0 %v554
    %954 = vmatprep.subr.mxu0 %v551
    %955 = vmatpush1.msra.mxu0 %v550
    %956 = vmatprep.subr.mxu0 %v547
    %957 = vmatpush1.msra.mxu0 %v546
    %958 = vmatprep.subr.mxu0 %v543
    %959 = vmatpush1.msra.mxu0 %v542
    %960 = vmatprep.subr.mxu0 %v539
    %961 = vmatpush1.msra.mxu0 %v538
    %962 = vmatprep.subr.mxu0 %v535
    %963 = vmatpush1.msra.mxu0 %v534
    %964 = vmatprep.subr.mxu0 %v659
    %965 = vmatpush2.msra.mxu0 %v658
    %966 = vmatprep.subr.mxu0 %v655
    %967 = vmatpush2.msra.mxu0 %v654
    %968 = vmatprep.subr.mxu0 %v651
    %969 = vmatpush2.msra.mxu0 %v650
    %970 = vmatprep.subr.mxu0 %v647
    %971 = vmatpush2.msra.mxu0 %v646
    %972 = vmatprep.subr.mxu0 %v643
    %973 = vmatpush2.msra.mxu0 %v642
    %974 = vmatprep.subr.mxu0 %v639
    %975 = vmatpush2.msra.mxu0 %v638
    %976 = vmatprep.subr.mxu0 %v635
    %977 = vmatpush2.msra.mxu0 %v634
    %978 = vmatprep.subr.mxu0 %v631
    %979 = vmatpush2.msra.mxu0 %v630
    %980 = vmatprep.subr.mxu0 %v627
    %981 = vmatpush2.msra.mxu0 %v626
    %982 = vmatprep.subr.mxu0 %v623
    %983 = vmatpush2.msra.mxu0 %v622
    %984 = vmatprep.subr.mxu0 %v619
    %985 = vmatpush2.msra.mxu0 %v618
    %986 = vmatprep.subr.mxu0 %v615
    %987 = vmatpush2.msra.mxu0 %v614
    %988 = vmatprep.subr.mxu0 %v611
    %989 = vmatpush2.msra.mxu0 %v610
    %990 = vmatprep.subr.mxu0 %v607
    %991 = vmatpush2.msra.mxu0 %v606
    %992 = vmatprep.subr.mxu0 %v603
    %993 = vmatpush2.msra.mxu0 %v602
    %994 = vmatprep.subr.mxu0 %v599
    %995 = vmatpush2.msra.mxu0 %v598
    %996 = vmatprep.mubr.f32.mxu0 %v206
    %997 = vmatmul.mubr.f32.gmra.mxu0 %v205
    %v998 = vpop.f32.mrf.mxu0
    %v999 = vadd.f32 %v857, %v998
    %v1000 = vpop.f32.mrf.mxu0
    %v1001 = vadd.f32 %v859, %v1000
    %1002 = vdwg.mxu0
    %1003 = vmatprep.subr.mxu0 %v597
    %1004 = vmatpush1.msra.mxu0 %v596
    %1005 = vmatprep.subr.mxu0 %v593
    %1006 = vmatpush1.msra.mxu0 %v592
    %1007 = vmatprep.subr.mxu0 %v589
    %1008 = vmatpush1.msra.mxu0 %v588
    %1009 = vmatprep.subr.mxu0 %v585
    %1010 = vmatpush1.msra.mxu0 %v584
    %1011 = vmatprep.subr.mxu0 %v581
    %1012 = vmatpush1.msra.mxu0 %v580
    %1013 = vmatprep.subr.mxu0 %v577
    %1014 = vmatpush1.msra.mxu0 %v576
    %1015 = vmatprep.subr.mxu0 %v573
    %1016 = vmatpush1.msra.mxu0 %v572
    %1017 = vmatprep.subr.mxu0 %v569
    %1018 = vmatpush1.msra.mxu0 %v568
    %1019 = vmatprep.subr.mxu0 %v565
    %1020 = vmatpush1.msra.mxu0 %v564
    %1021 = vmatprep.subr.mxu0 %v561
    %1022 = vmatpush1.msra.mxu0 %v560
    %1023 = vmatprep.subr.mxu0 %v557
    %1024 = vmatpush1.msra.mxu0 %v556
    %1025 = vmatprep.subr.mxu0 %v553
    %1026 = vmatpush1.msra.mxu0 %v552
    %1027 = vmatprep.subr.mxu0 %v549
    %1028 = vmatpush1.msra.mxu0 %v548
    %1029 = vmatprep.subr.mxu0 %v545
    %1030 = vmatpush1.msra.mxu0 %v544
    %1031 = vmatprep.subr.mxu0 %v541
    %1032 = vmatpush1.msra.mxu0 %v540
    %1033 = vmatprep.subr.mxu0 %v537
    %1034 = vmatpush1.msra.mxu0 %v536
    %1035 = vmatprep.subr.mxu0 %v661
    %1036 = vmatpush2.msra.mxu0 %v660
    %1037 = vmatprep.subr.mxu0 %v657
    %1038 = vmatpush2.msra.mxu0 %v656
    %1039 = vmatprep.subr.mxu0 %v653
    %1040 = vmatpush2.msra.mxu0 %v652
    %1041 = vmatprep.subr.mxu0 %v649
    %1042 = vmatpush2.msra.mxu0 %v648
    %1043 = vmatprep.subr.mxu0 %v645
    %1044 = vmatpush2.msra.mxu0 %v644
    %1045 = vmatprep.subr.mxu0 %v641
    %1046 = vmatpush2.msra.mxu0 %v640
    %1047 = vmatprep.subr.mxu0 %v637
    %1048 = vmatpush2.msra.mxu0 %v636
    %1049 = vmatprep.subr.mxu0 %v633
    %1050 = vmatpush2.msra.mxu0 %v632
    %1051 = vmatprep.subr.mxu0 %v629
    %1052 = vmatpush2.msra.mxu0 %v628
    %1053 = vmatprep.subr.mxu0 %v625
    %1054 = vmatpush2.msra.mxu0 %v624
    %1055 = vmatprep.subr.mxu0 %v621
    %1056 = vmatpush2.msra.mxu0 %v620
    %1057 = vmatprep.subr.mxu0 %v617
    %1058 = vmatpush2.msra.mxu0 %v616
    %1059 = vmatprep.subr.mxu0 %v613
    %1060 = vmatpush2.msra.mxu0 %v612
    %1061 = vmatprep.subr.mxu0 %v609
    %1062 = vmatpush2.msra.mxu0 %v608
    %1063 = vmatprep.subr.mxu0 %v605
    %1064 = vmatpush2.msra.mxu0 %v604
    %1065 = vmatprep.subr.mxu0 %v601
    %1066 = vmatpush2.msra.mxu0 %v600
    %1067 = vmatprep.mubr.f32.mxu0 %v206
    %1068 = vmatmul.mubr.f32.gmra.mxu0 %v205
    %v1069 = vpop.f32.mrf.mxu0
    %v1070 = vadd.f32 %v928, %v1069
    %v1071 = vpop.f32.mrf.mxu0
    %v1072 = vadd.f32 %v930, %v1071
    %1073 = vdwg.mxu0
    %v1074 = vld [vmem:[#allocation14 + $0x800] sm:$0xff]
    %v1075 = vld [vmem:[#allocation14 + $0x808] sm:$0xff]
    %v1076 = vld [vmem:[#allocation14 + $0x810] sm:$0xff]
    %v1077 = vld [vmem:[#allocation14 + $0x818] sm:$0xff]
    %v1078 = vld [vmem:[#allocation14 + $0x820] sm:$0xff]
    %v1079 = vld [vmem:[#allocation14 + $0x828] sm:$0xff]
    %v1080 = vld [vmem:[#allocation14 + $0x830] sm:$0xff]
    %v1081 = vld [vmem:[#allocation14 + $0x838] sm:$0xff]
    %v1082 = vld [vmem:[#allocation14 + $0x840] sm:$0xff]
    %v1083 = vld [vmem:[#allocation14 + $0x848] sm:$0xff]
    %v1084 = vld [vmem:[#allocation14 + $0x850] sm:$0xff]
    %v1085 = vld [vmem:[#allocation14 + $0x858] sm:$0xff]
    %v1086 = vld [vmem:[#allocation14 + $0x860] sm:$0xff]
    %v1087 = vld [vmem:[#allocation14 + $0x868] sm:$0xff]
    %v1088 = vld [vmem:[#allocation14 + $0x870] sm:$0xff]
    %v1089 = vld [vmem:[#allocation14 + $0x878] sm:$0xff]
    %v1090 = vld [vmem:[#allocation14 + $0x880] sm:$0xff]
    %v1091 = vld [vmem:[#allocation14 + $0x888] sm:$0xff]
    %v1092 = vld [vmem:[#allocation14 + $0x890] sm:$0xff]
    %v1093 = vld [vmem:[#allocation14 + $0x898] sm:$0xff]
    %v1094 = vld [vmem:[#allocation14 + $0x8a0] sm:$0xff]
    %v1095 = vld [vmem:[#allocation14 + $0x8a8] sm:$0xff]
    %v1096 = vld [vmem:[#allocation14 + $0x8b0] sm:$0xff]
    %v1097 = vld [vmem:[#allocation14 + $0x8b8] sm:$0xff]
    %v1098 = vld [vmem:[#allocation14 + $0x8c0] sm:$0xff]
    %v1099 = vld [vmem:[#allocation14 + $0x8c8] sm:$0xff]
    %v1100 = vld [vmem:[#allocation14 + $0x8d0] sm:$0xff]
    %v1101 = vld [vmem:[#allocation14 + $0x8d8] sm:$0xff]
    %v1102 = vld [vmem:[#allocation14 + $0x8e0] sm:$0xff]
    %v1103 = vld [vmem:[#allocation14 + $0x8e8] sm:$0xff]
    %v1104 = vld [vmem:[#allocation14 + $0x8f0] sm:$0xff]
    %v1105 = vld [vmem:[#allocation14 + $0x8f8] sm:$0xff]
    %v1106 = vld [vmem:[#allocation14 + $0x900] sm:$0xff]
    %v1107 = vld [vmem:[#allocation14 + $0x908] sm:$0xff]
    %v1108 = vld [vmem:[#allocation14 + $0x910] sm:$0xff]
    %v1109 = vld [vmem:[#allocation14 + $0x918] sm:$0xff]
    %v1110 = vld [vmem:[#allocation14 + $0x920] sm:$0xff]
    %v1111 = vld [vmem:[#allocation14 + $0x928] sm:$0xff]
    %v1112 = vld [vmem:[#allocation14 + $0x930] sm:$0xff]
    %v1113 = vld [vmem:[#allocation14 + $0x938] sm:$0xff]
    %v1114 = vld [vmem:[#allocation14 + $0x940] sm:$0xff]
    %v1115 = vld [vmem:[#allocation14 + $0x948] sm:$0xff]
    %v1116 = vld [vmem:[#allocation14 + $0x950] sm:$0xff]
    %v1117 = vld [vmem:[#allocation14 + $0x958] sm:$0xff]
    %v1118 = vld [vmem:[#allocation14 + $0x960] sm:$0xff]
    %v1119 = vld [vmem:[#allocation14 + $0x968] sm:$0xff]
    %v1120 = vld [vmem:[#allocation14 + $0x970] sm:$0xff]
    %v1121 = vld [vmem:[#allocation14 + $0x978] sm:$0xff]
    %v1122 = vld [vmem:[#allocation14 + $0x980] sm:$0xff]
    %v1123 = vld [vmem:[#allocation14 + $0x988] sm:$0xff]
    %v1124 = vld [vmem:[#allocation14 + $0x990] sm:$0xff]
    %v1125 = vld [vmem:[#allocation14 + $0x998] sm:$0xff]
    %v1126 = vld [vmem:[#allocation14 + $0x9a0] sm:$0xff]
    %v1127 = vld [vmem:[#allocation14 + $0x9a8] sm:$0xff]
    %v1128 = vld [vmem:[#allocation14 + $0x9b0] sm:$0xff]
    %v1129 = vld [vmem:[#allocation14 + $0x9b8] sm:$0xff]
    %v1130 = vld [vmem:[#allocation14 + $0x9c0] sm:$0xff]
    %v1131 = vld [vmem:[#allocation14 + $0x9c8] sm:$0xff]
    %v1132 = vld [vmem:[#allocation14 + $0x9d0] sm:$0xff]
    %v1133 = vld [vmem:[#allocation14 + $0x9d8] sm:$0xff]
    %v1134 = vld [vmem:[#allocation14 + $0x9e0] sm:$0xff]
    %v1135 = vld [vmem:[#allocation14 + $0x9e8] sm:$0xff]
    %v1136 = vld [vmem:[#allocation14 + $0x9f0] sm:$0xff]
    %v1137 = vld [vmem:[#allocation14 + $0x9f8] sm:$0xff]
    %v1138 = vld [vmem:[#allocation14 + $0xa00] sm:$0xff]
    %v1139 = vld [vmem:[#allocation14 + $0xa08] sm:$0xff]
    %v1140 = vld [vmem:[#allocation14 + $0xa10] sm:$0xff]
    %v1141 = vld [vmem:[#allocation14 + $0xa18] sm:$0xff]
    %v1142 = vld [vmem:[#allocation14 + $0xa20] sm:$0xff]
    %v1143 = vld [vmem:[#allocation14 + $0xa28] sm:$0xff]
    %v1144 = vld [vmem:[#allocation14 + $0xa30] sm:$0xff]
    %v1145 = vld [vmem:[#allocation14 + $0xa38] sm:$0xff]
    %v1146 = vld [vmem:[#allocation14 + $0xa40] sm:$0xff]
    %v1147 = vld [vmem:[#allocation14 + $0xa48] sm:$0xff]
    %v1148 = vld [vmem:[#allocation14 + $0xa50] sm:$0xff]
    %v1149 = vld [vmem:[#allocation14 + $0xa58] sm:$0xff]
    %v1150 = vld [vmem:[#allocation14 + $0xa60] sm:$0xff]
    %v1151 = vld [vmem:[#allocation14 + $0xa68] sm:$0xff]
    %v1152 = vld [vmem:[#allocation14 + $0xa70] sm:$0xff]
    %v1153 = vld [vmem:[#allocation14 + $0xa78] sm:$0xff]
    %v1154 = vld [vmem:[#allocation14 + $0xa80] sm:$0xff]
    %v1155 = vld [vmem:[#allocation14 + $0xa88] sm:$0xff]
    %v1156 = vld [vmem:[#allocation14 + $0xa90] sm:$0xff]
    %v1157 = vld [vmem:[#allocation14 + $0xa98] sm:$0xff]
    %v1158 = vld [vmem:[#allocation14 + $0xaa0] sm:$0xff]
    %v1159 = vld [vmem:[#allocation14 + $0xaa8] sm:$0xff]
    %v1160 = vld [vmem:[#allocation14 + $0xab0] sm:$0xff]
    %v1161 = vld [vmem:[#allocation14 + $0xab8] sm:$0xff]
    %v1162 = vld [vmem:[#allocation14 + $0xac0] sm:$0xff]
    %v1163 = vld [vmem:[#allocation14 + $0xac8] sm:$0xff]
    %v1164 = vld [vmem:[#allocation14 + $0xad0] sm:$0xff]
    %v1165 = vld [vmem:[#allocation14 + $0xad8] sm:$0xff]
    %v1166 = vld [vmem:[#allocation14 + $0xae0] sm:$0xff]
    %v1167 = vld [vmem:[#allocation14 + $0xae8] sm:$0xff]
    %v1168 = vld [vmem:[#allocation14 + $0xaf0] sm:$0xff]
    %v1169 = vld [vmem:[#allocation14 + $0xaf8] sm:$0xff]
    %v1170 = vld [vmem:[#allocation14 + $0xb00] sm:$0xff]
    %v1171 = vld [vmem:[#allocation14 + $0xb08] sm:$0xff]
    %v1172 = vld [vmem:[#allocation14 + $0xb10] sm:$0xff]
    %v1173 = vld [vmem:[#allocation14 + $0xb18] sm:$0xff]
    %v1174 = vld [vmem:[#allocation14 + $0xb20] sm:$0xff]
    %v1175 = vld [vmem:[#allocation14 + $0xb28] sm:$0xff]
    %v1176 = vld [vmem:[#allocation14 + $0xb30] sm:$0xff]
    %v1177 = vld [vmem:[#allocation14 + $0xb38] sm:$0xff]
    %v1178 = vld [vmem:[#allocation14 + $0xb40] sm:$0xff]
    %v1179 = vld [vmem:[#allocation14 + $0xb48] sm:$0xff]
    %v1180 = vld [vmem:[#allocation14 + $0xb50] sm:$0xff]
    %v1181 = vld [vmem:[#allocation14 + $0xb58] sm:$0xff]
    %v1182 = vld [vmem:[#allocation14 + $0xb60] sm:$0xff]
    %v1183 = vld [vmem:[#allocation14 + $0xb68] sm:$0xff]
    %v1184 = vld [vmem:[#allocation14 + $0xb70] sm:$0xff]
    %v1185 = vld [vmem:[#allocation14 + $0xb78] sm:$0xff]
    %v1186 = vld [vmem:[#allocation14 + $0xb80] sm:$0xff]
    %v1187 = vld [vmem:[#allocation14 + $0xb88] sm:$0xff]
    %v1188 = vld [vmem:[#allocation14 + $0xb90] sm:$0xff]
    %v1189 = vld [vmem:[#allocation14 + $0xb98] sm:$0xff]
    %v1190 = vld [vmem:[#allocation14 + $0xba0] sm:$0xff]
    %v1191 = vld [vmem:[#allocation14 + $0xba8] sm:$0xff]
    %v1192 = vld [vmem:[#allocation14 + $0xbb0] sm:$0xff]
    %v1193 = vld [vmem:[#allocation14 + $0xbb8] sm:$0xff]
    %v1194 = vld [vmem:[#allocation14 + $0xbc0] sm:$0xff]
    %v1195 = vld [vmem:[#allocation14 + $0xbc8] sm:$0xff]
    %v1196 = vld [vmem:[#allocation14 + $0xbd0] sm:$0xff]
    %v1197 = vld [vmem:[#allocation14 + $0xbd8] sm:$0xff]
    %v1198 = vld [vmem:[#allocation14 + $0xbe0] sm:$0xff]
    %v1199 = vld [vmem:[#allocation14 + $0xbe8] sm:$0xff]
    %v1200 = vld [vmem:[#allocation14 + $0xbf0] sm:$0xff]
    %v1201 = vld [vmem:[#allocation14 + $0xbf8] sm:$0xff]
    %1202 = vmatprep.subr.mxu0 %v1135
    %1203 = vmatpush1.msra.mxu0 %v1134
    %1204 = vmatprep.subr.mxu0 %v1131
    %1205 = vmatpush1.msra.mxu0 %v1130
    %1206 = vmatprep.subr.mxu0 %v1127
    %1207 = vmatpush1.msra.mxu0 %v1126
    %1208 = vmatprep.subr.mxu0 %v1123
    %1209 = vmatpush1.msra.mxu0 %v1122
    %1210 = vmatprep.subr.mxu0 %v1119
    %1211 = vmatpush1.msra.mxu0 %v1118
    %1212 = vmatprep.subr.mxu0 %v1115
    %1213 = vmatpush1.msra.mxu0 %v1114
    %1214 = vmatprep.subr.mxu0 %v1111
    %1215 = vmatpush1.msra.mxu0 %v1110
    %1216 = vmatprep.subr.mxu0 %v1107
    %1217 = vmatpush1.msra.mxu0 %v1106
    %1218 = vmatprep.subr.mxu0 %v1103
    %1219 = vmatpush1.msra.mxu0 %v1102
    %1220 = vmatprep.subr.mxu0 %v1099
    %1221 = vmatpush1.msra.mxu0 %v1098
    %1222 = vmatprep.subr.mxu0 %v1095
    %1223 = vmatpush1.msra.mxu0 %v1094
    %1224 = vmatprep.subr.mxu0 %v1091
    %1225 = vmatpush1.msra.mxu0 %v1090
    %1226 = vmatprep.subr.mxu0 %v1087
    %1227 = vmatpush1.msra.mxu0 %v1086
    %1228 = vmatprep.subr.mxu0 %v1083
    %1229 = vmatpush1.msra.mxu0 %v1082
    %1230 = vmatprep.subr.mxu0 %v1079
    %1231 = vmatpush1.msra.mxu0 %v1078
    %1232 = vmatprep.subr.mxu0 %v1075
    %1233 = vmatpush1.msra.mxu0 %v1074
    %1234 = vmatprep.subr.mxu0 %v1199
    %1235 = vmatpush2.msra.mxu0 %v1198
    %1236 = vmatprep.subr.mxu0 %v1195
    %1237 = vmatpush2.msra.mxu0 %v1194
    %1238 = vmatprep.subr.mxu0 %v1191
    %1239 = vmatpush2.msra.mxu0 %v1190
    %1240 = vmatprep.subr.mxu0 %v1187
    %1241 = vmatpush2.msra.mxu0 %v1186
    %1242 = vmatprep.subr.mxu0 %v1183
    %1243 = vmatpush2.msra.mxu0 %v1182
    %1244 = vmatprep.subr.mxu0 %v1179
    %1245 = vmatpush2.msra.mxu0 %v1178
    %1246 = vmatprep.subr.mxu0 %v1175
    %1247 = vmatpush2.msra.mxu0 %v1174
    %1248 = vmatprep.subr.mxu0 %v1171
    %1249 = vmatpush2.msra.mxu0 %v1170
    %1250 = vmatprep.subr.mxu0 %v1167
    %1251 = vmatpush2.msra.mxu0 %v1166
    %1252 = vmatprep.subr.mxu0 %v1163
    %1253 = vmatpush2.msra.mxu0 %v1162
    %1254 = vmatprep.subr.mxu0 %v1159
    %1255 = vmatpush2.msra.mxu0 %v1158
    %1256 = vmatprep.subr.mxu0 %v1155
    %1257 = vmatpush2.msra.mxu0 %v1154
    %1258 = vmatprep.subr.mxu0 %v1151
    %1259 = vmatpush2.msra.mxu0 %v1150
    %1260 = vmatprep.subr.mxu0 %v1147
    %1261 = vmatpush2.msra.mxu0 %v1146
    %1262 = vmatprep.subr.mxu0 %v1143
    %1263 = vmatpush2.msra.mxu0 %v1142
    %1264 = vmatprep.subr.mxu0 %v1139
    %1265 = vmatpush2.msra.mxu0 %v1138
    %1266 = vmatprep.mubr.f32.mxu0 %v516
    %1267 = vmatmul.mubr.f32.gmra.mxu0 %v515
    %v1268 = vpop.f32.mrf.mxu0
    %v1269 = vadd.f32 0.0, %v1268
    %v1270 = vpop.f32.mrf.mxu0
    %v1271 = vadd.f32 0.0, %v1270
    %1272 = vdwg.mxu0
    %1273 = vmatprep.subr.mxu0 %v1137
    %1274 = vmatpush1.msra.mxu0 %v1136
    %1275 = vmatprep.subr.mxu0 %v1133
    %1276 = vmatpush1.msra.mxu0 %v1132
    %1277 = vmatprep.subr.mxu0 %v1129
    %1278 = vmatpush1.msra.mxu0 %v1128
    %1279 = vmatprep.subr.mxu0 %v1125
    %1280 = vmatpush1.msra.mxu0 %v1124
    %1281 = vmatprep.subr.mxu0 %v1121
    %1282 = vmatpush1.msra.mxu0 %v1120
    %1283 = vmatprep.subr.mxu0 %v1117
    %1284 = vmatpush1.msra.mxu0 %v1116
    %1285 = vmatprep.subr.mxu0 %v1113
    %1286 = vmatpush1.msra.mxu0 %v1112
    %1287 = vmatprep.subr.mxu0 %v1109
    %1288 = vmatpush1.msra.mxu0 %v1108
    %1289 = vmatprep.subr.mxu0 %v1105
    %1290 = vmatpush1.msra.mxu0 %v1104
    %1291 = vmatprep.subr.mxu0 %v1101
    %1292 = vmatpush1.msra.mxu0 %v1100
    %1293 = vmatprep.subr.mxu0 %v1097
    %1294 = vmatpush1.msra.mxu0 %v1096
    %1295 = vmatprep.subr.mxu0 %v1093
    %1296 = vmatpush1.msra.mxu0 %v1092
    %1297 = vmatprep.subr.mxu0 %v1089
    %1298 = vmatpush1.msra.mxu0 %v1088
    %1299 = vmatprep.subr.mxu0 %v1085
    %1300 = vmatpush1.msra.mxu0 %v1084
    %1301 = vmatprep.subr.mxu0 %v1081
    %1302 = vmatpush1.msra.mxu0 %v1080
    %1303 = vmatprep.subr.mxu0 %v1077
    %1304 = vmatpush1.msra.mxu0 %v1076
    %1305 = vmatprep.subr.mxu0 %v1201
    %1306 = vmatpush2.msra.mxu0 %v1200
    %1307 = vmatprep.subr.mxu0 %v1197
    %1308 = vmatpush2.msra.mxu0 %v1196
    %1309 = vmatprep.subr.mxu0 %v1193
    %1310 = vmatpush2.msra.mxu0 %v1192
    %1311 = vmatprep.subr.mxu0 %v1189
    %1312 = vmatpush2.msra.mxu0 %v1188
    %1313 = vmatprep.subr.mxu0 %v1185
    %1314 = vmatpush2.msra.mxu0 %v1184
    %1315 = vmatprep.subr.mxu0 %v1181
    %1316 = vmatpush2.msra.mxu0 %v1180
    %1317 = vmatprep.subr.mxu0 %v1177
    %1318 = vmatpush2.msra.mxu0 %v1176
    %1319 = vmatprep.subr.mxu0 %v1173
    %1320 = vmatpush2.msra.mxu0 %v1172
    %1321 = vmatprep.subr.mxu0 %v1169
    %1322 = vmatpush2.msra.mxu0 %v1168
    %1323 = vmatprep.subr.mxu0 %v1165
    %1324 = vmatpush2.msra.mxu0 %v1164
    %1325 = vmatprep.subr.mxu0 %v1161
    %1326 = vmatpush2.msra.mxu0 %v1160
    %1327 = vmatprep.subr.mxu0 %v1157
    %1328 = vmatpush2.msra.mxu0 %v1156
    %1329 = vmatprep.subr.mxu0 %v1153
    %1330 = vmatpush2.msra.mxu0 %v1152
    %1331 = vmatprep.subr.mxu0 %v1149
    %1332 = vmatpush2.msra.mxu0 %v1148
    %1333 = vmatprep.subr.mxu0 %v1145
    %1334 = vmatpush2.msra.mxu0 %v1144
    %1335 = vmatprep.subr.mxu0 %v1141
    %1336 = vmatpush2.msra.mxu0 %v1140
    %1337 = vmatprep.mubr.f32.mxu0 %v516
    %1338 = vmatmul.mubr.f32.gmra.mxu0 %v515
    %v1339 = vpop.f32.mrf.mxu0
    %v1340 = vadd.f32 0.0, %v1339
    %v1341 = vpop.f32.mrf.mxu0
    %v1342 = vadd.f32 0.0, %v1341
    %1343 = vdwg.mxu0
    %v1344 = vadd.f32 %v999, %v1269
    %v1345 = vadd.f32 %v1001, %v1271
    %v1346 = vadd.f32 %v1070, %v1340
    %v1347 = vadd.f32 %v1072, %v1342
    %v1348 = vld [vmem:[#allocation16] sm:$0xf]
    %v1350 = vlaneseq
    %v1351 = vshrl.u32 %v1350, 7
    %v1352 = vsub.s32 0, %v1351
    %v1353 = vrot.slane %v1348, %v1352
    %v1354 = vlaneseq
    %v1355 = vshrl.u32 %v1354, 7
    %v1356 = vsub.s32 1, %v1355
    %v1357 = vrot.slane %v1348, %v1356
    %v1358 = vlaneseq
    %v1359 = vshrl.u32 %v1358, 7
    %v1360 = vsub.s32 2, %v1359
    %v1361 = vrot.slane %v1348, %v1360
    %v1362 = vlaneseq
    %v1363 = vshrl.u32 %v1362, 7
    %v1364 = vsub.s32 3, %v1363
    %v1365 = vrot.slane %v1348, %v1364
    %v1370 = vadd.f32 %v1344, %v1353
    %v1371 = vadd.f32 %v1345, %v1357
    %v1372 = vadd.f32 %v1346, %v1361
    %v1373 = vadd.f32 %v1347, %v1365
    %v1374 = vtanh.pop %v1370
    %v1375 = vtanh.pop %v1371
    %v1376 = vtanh.pop %v1372
    %v1377 = vtanh.pop %v1373
    %v1378 = vld [vmem:[#allocation17] sm:$0xf]
    %v1380 = vlaneseq
    %v1381 = vshrl.u32 %v1380, 7
    %v1382 = vsub.s32 0, %v1381
    %v1383 = vrot.slane %v1378, %v1382
    %v1384 = vlaneseq
    %v1385 = vshrl.u32 %v1384, 7
    %v1386 = vsub.s32 1, %v1385
    %v1387 = vrot.slane %v1378, %v1386
    %v1388 = vlaneseq
    %v1389 = vshrl.u32 %v1388, 7
    %v1390 = vsub.s32 2, %v1389
    %v1391 = vrot.slane %v1378, %v1390
    %v1392 = vlaneseq
    %v1393 = vshrl.u32 %v1392, 7
    %v1394 = vsub.s32 3, %v1393
    %v1395 = vrot.slane %v1378, %v1394
    %v1400 = vmul.f32 %v1374, %v1383
    %v1401 = vmul.f32 %v1375, %v1387
    %v1402 = vmul.f32 %v1376, %v1391
    %v1403 = vmul.f32 %v1377, %v1395
    %v1404 = vadd.f32 %v1400, %v1401
    %v1405 = vadd.f32 %v1404, %v1402
    %v1406 = vadd.f32 %v1405, %v1403
    %1407 = vadd.xlane.f32.xlu0 %v1406
    %v1408 = vpop.xlane.xlu0 %1407
    %v1409 = vld [vmem:[#allocation2] sm:$0x1]
    %v1411 = vlaneseq
    %v1412 = vshrl.u32 %v1411, 7
    %v1413 = vsub.s32 0, %v1412
    %v1414 = vrot.slane %v1409, %v1413
    %v1416 = vadd.f32 %v1408, %v1414
    %v1417 = vadd.f32 %v533, %v1416
    %vm1418 = vcmask 7168
    %1419 = vst.msk [vmem:[%s12] sm:$0xff] %vm1418, %v1417
    // Predicated region
    $region90: #{tpu_custom_call.1} parent=1 // pred_check
      _
    $region91: #{tpu_custom_call.1} parent=1 // pred_check_branch
      %1421 = sbr.rel (0) target = $region93
    $region92: #{tpu_custom_call.1} parent=1 // pred_region
      _
    $region93: #{tpu_custom_call.1} parent=1 // pred_fallthru
      _
    // Predicated region
    $region94: #{tpu_custom_call.1} parent=1 // pred_check
      _
    $region95: #{tpu_custom_call.1} parent=1 // pred_check_branch
      %1423 = sbr.rel (0) target = $region97
    $region96: #{tpu_custom_call.1} parent=1 // pred_region
      _
    $region97: #{tpu_custom_call.1} parent=1 // pred_fallthru
      _
    %1424 = vsyncpa [#allocation4], 1
    %1425 = vsyncpa [#allocation6], 1
    %1426 = vsyncpa [#allocation9], 1
    %1427 = vsyncpa [#allocation12], 1
    %1428 = vsyncpa [#allocation15], 1
    %1429 = vsyncpa [#allocation18], 1

</llo_original>
